<compile_context>
chip_gen: v7x
topology: tpu7x:2x2x1
jax: 0.10.0
libtpu: 0.0.40
codegen_flags: <defaults>
</compile_context>

<pallas_src>
import jax
import jax.numpy as jnp
from jax import lax
from jax.experimental import pallas as pl
from jax.experimental.pallas import tpu as pltpu

# Implicit-layer hyperparameters (deterministic "init" values, baked in).
BETA_INIT = 0.8
GAMMA_INIT = 0.9
MAX_ITERS = 20          # fixed number of fixed-point iterations
DROPOUT = 0.5           # unused at inference (training=False => identity)

SUBLANE = 8
LANE = 128


def _round_up(v, m):
    return (v + m - 1) // m * m


def _pad2d(arr, rows, cols):
    r, c = arr.shape
    return jnp.pad(arr, ((0, rows - r), (0, cols - c)))


def model_kernel(x_ref, a_ref, w_in_ref, b_in_ref, w_dec_ref, b_dec_ref,
                 out_ref):
    # ---- fused enc Linear + bias Linear (dropout is identity at eval) -------
    # bx = beta * ((x @ W_enc + b_enc) @ W_b) = x @ W_in + b_in   (beta folded)
    bx = jnp.dot(x_ref[...], w_in_ref[...],
                 preferred_element_type=jnp.float32) + b_in_ref[...]

    # ---- implicit graph layer ------------------------------------------------
    # A already holds beta*gamma*A (dense).  Single VMEM load, hoisted.
    a = a_ref[...]
    one_minus_beta = 1.0 - BETA_INIT

    # Reference iteration: z_{k+1} = (1-b) z_k + b*ReLU(g*A@z_k + bx_orig)
    # With constants folded (b > 0):  z_{k+1} = (1-b) z_k + ReLU(A@z_k + bx).
    # Iteration 0 from z = 0 reduces to ReLU(bx); the A @ 0 matmul is skipped,
    # so only MAX_ITERS - 1 iterations remain (bit-identical in f32).
    z0 = jnp.maximum(bx, 0.0)

    def body(_, z):
        az = jnp.dot(a, z, preferred_element_type=jnp.float32)
        return one_minus_beta * z + jnp.maximum(az + bx, 0.0)

    z = lax.fori_loop(0, MAX_ITERS - 1, body, z0, unroll=True)
    # TODO(synk): tol-based early exit of the fixed-point solve and
    # phantom_grad (backward-only) are not reproduced; a fixed MAX_ITERS
    # iteration count is used instead.

    # ---- outer activation (no-op in exact arithmetic since z >= 0) ----------
    z = jnp.maximum(z, 0.0)

    # ---- dec: Linear(hidden_channels -> out_channels) -----------------------
    out_ref[...] = (jnp.dot(z, w_dec_ref[...],
                            preferred_element_type=jnp.float32)
                    + b_dec_ref[...]).astype(out_ref.dtype)


def model_forward(x, edge_index, edge_weight, params):
    """x: (N, in_channels) f32, edge_index: (2, E) int32, edge_weight: (E,) f32."""
    n, cin = x.shape
    w_enc, b_enc, w_b, w_dec, b_dec = params
    hidden = w_enc.shape[1]
    cout = w_dec.shape[1]

    # Lane/sublane-dense padded sizes (zero padding is output-preserving).
    n_p = _round_up(n, SUBLANE)
    cin_p = _round_up(cin, LANE)
    hid_p = _round_up(hidden, LANE)
    cout_p = _round_up(cout, LANE)

    # Glue: densify the sparse graph.  A[dst, src] = w (message src -> dst),
    # duplicate edges accumulate.
    # TODO(synk): for large E replace this XLA scatter with sort+segment_sum or
    # precompute A once per graph outside the per-call path.
    a = jnp.zeros((n, n), jnp.float32).at[
        edge_index[1], edge_index[0]].add(edge_weight.astype(jnp.float32))
    # Fold beta*gamma into A (constants off the 19-step serial chain).
    a_p = _pad2d((BETA_INIT * GAMMA_INIT) * a, n_p, n_p)

    # Fuse enc Linear with the bias Linear of the implicit layer, fold beta.
    w_in = BETA_INIT * (w_enc @ w_b)
    b_in = BETA_INIT * (b_enc @ w_b)

    x_p = _pad2d(x.astype(jnp.float32), n_p, cin_p)
    w_in_p = _pad2d(w_in, cin_p, hid_p)
    b_in_p = _pad2d(b_in.reshape(1, -1), 1, hid_p)
    w_dec_p = _pad2d(w_dec, hid_p, cout_p)
    b_dec_p = _pad2d(b_dec.reshape(1, -1), 1, cout_p)

    operands = (x_p, a_p, w_in_p, b_in_p, w_dec_p, b_dec_p)

    # NOTE: when n is not a multiple of 8, padded x rows see bx = b_in
    # (non-zero) and produce junk z rows; this is benign because A's padded
    # columns are zero and the output is sliced back to [:n, :cout].

    # Generation-aware VMEM budget (everything resident + headroom).
    resident_bytes = sum(int(v.size) * v.dtype.itemsize for v in operands)
    resident_bytes += n_p * cout_p * 4  # output tile
    try:
        vmem_cap = int(getattr(pltpu.get_tpu_info(), "vmem_capacity_bytes",
                               64 * 2**20))
    except Exception:
        vmem_cap = 64 * 2**20   # safe on every generation (v7x has 64 MiB)
    vmem_limit = int(min(max(4 * resident_bytes, 32 * 2**20),
                         int(0.9 * vmem_cap)))

    vmem = pl.BlockSpec(memory_space=pltpu.MemorySpace.VMEM)
    out_p = pl.pallas_call(
        model_kernel,
        out_shape=jax.ShapeDtypeStruct((n_p, cout_p), jnp.float32),
        in_specs=[vmem] * 6,
        out_specs=vmem,
        compiler_params=pltpu.CompilerParams(vmem_limit_bytes=vmem_limit),
    )(*operands)

    return out_p[:n, :cout]


def init_params(key, in_channels, hidden_channels, out_channels):
    """Deterministic parameter init.  Weights stored (in, out) so the kernel
    computes x @ W (equivalent to PyTorch's x @ W_torch.T)."""
    k1, k2, k3, k4, k5 = jax.random.split(key, 5)
    s_enc = 1.0 / jnp.sqrt(in_channels)
    s_hid = 1.0 / jnp.sqrt(hidden_channels)
    w_enc = jax.random.uniform(k1, (in_channels, hidden_channels),
                               jnp.float32, -s_enc, s_enc)
    b_enc = jax.random.uniform(k2, (hidden_channels,), jnp.float32, -s_enc, s_enc)
    w_b = jax.random.uniform(k3, (hidden_channels, hidden_channels),
                             jnp.float32, -s_hid, s_hid)
    w_dec = jax.random.uniform(k4, (hidden_channels, out_channels),
                               jnp.float32, -s_hid, s_hid)
    b_dec = jax.random.uniform(k5, (out_channels,), jnp.float32, -s_hid, s_hid)
    return (w_enc, b_enc, w_b, w_dec, b_dec)


if __name__ == "__main__":
    in_channels, hidden_channels, out_channels = 8, 32, 4
    n_nodes, n_edges = 16, 40

    key = jax.random.PRNGKey(0)
    kx, ke, kw, kp = jax.random.split(key, 4)

    x = jax.random.normal(kx, (n_nodes, in_channels), jnp.float32)
    edge_index = jax.random.randint(ke, (2, n_edges), 0, n_nodes, jnp.int32)
    edge_weight = jax.random.uniform(kw, (n_edges,), jnp.float32)

    params = init_params(kp, in_channels, hidden_channels, out_channels)

    out = model_forward(x, edge_index, edge_weight, params)
    jax.block_until_ready(out)
    assert out.shape == (n_nodes, out_channels) and out.dtype == jnp.float32
    assert bool(jnp.all(jnp.isfinite(out)))
    print("KERNEL_OK")
</pallas_src>

<mosaic_0001>
module attributes {stable_mosaic.version = 11 : i64} {
  func.func @model_kernel(%arg0: memref<16x128xf32, #tpu.memory_space<vmem>>, %arg1: memref<16x16xf32, #tpu.memory_space<vmem>>, %arg2: memref<128x128xf32, #tpu.memory_space<vmem>>, %arg3: memref<1x128xf32, #tpu.memory_space<vmem>>, %arg4: memref<128x128xf32, #tpu.memory_space<vmem>>, %arg5: memref<1x128xf32, #tpu.memory_space<vmem>>, %arg6: memref<16x128xf32, #tpu.memory_space<vmem>>) attributes {dimension_semantics = [], scalar_prefetch = 0 : i64, scratch_operands = 0 : i64, tpu.core_type = #tpu.core_type<tc>} {
    %c0 = arith.constant 0 : index
    %c0_0 = arith.constant 0 : index
    %0 = vector.load %arg0[%c0, %c0_0] : memref<16x128xf32, #tpu.memory_space<vmem>>, vector<16x128xf32>
    %c0_1 = arith.constant 0 : index
    %c0_2 = arith.constant 0 : index
    %1 = vector.load %arg2[%c0_1, %c0_2] : memref<128x128xf32, #tpu.memory_space<vmem>>, vector<128x128xf32>
    %cst = arith.constant dense<0.000000e+00> : vector<16x128xf32>
    %2 = tpu.matmul %0, %1, %cst {dimension_numbers = #tpu.dot_dimension_numbers<[1], [0], [0], [1], [0, 0, 1, 1], [], []>} : vector<16x128xf32>, vector<128x128xf32>, vector<16x128xf32> -> vector<16x128xf32>
    %c0_3 = arith.constant 0 : index
    %c0_4 = arith.constant 0 : index
    %3 = vector.load %arg3[%c0_3, %c0_4] : memref<1x128xf32, #tpu.memory_space<vmem>>, vector<1x128xf32>
    %4 = vector.broadcast %3 : vector<1x128xf32> to vector<16x128xf32>
    %5 = arith.addf %2, %4 : vector<16x128xf32>
    %c0_5 = arith.constant 0 : index
    %c0_6 = arith.constant 0 : index
    %6 = vector.load %arg1[%c0_5, %c0_6] : memref<16x16xf32, #tpu.memory_space<vmem>>, vector<16x16xf32>
    %cst_7 = arith.constant 0.000000e+00 : f32
    %7 = vector.broadcast %cst_7 : f32 to vector<16x128xf32>
    %8 = arith.maximumf %5, %7 : vector<16x128xf32>
    %c0_i32 = arith.constant 0 : i32
    %cst_8 = arith.constant dense<0.000000e+00> : vector<16x128xf32>
    %9 = tpu.matmul %6, %8, %cst_8 {dimension_numbers = #tpu.dot_dimension_numbers<[1], [0], [0], [1], [0, 0, 1, 1], [], []>} : vector<16x16xf32>, vector<16x128xf32>, vector<16x128xf32> -> vector<16x128xf32>
    %cst_9 = arith.constant 2.000000e-01 : f32
    %10 = vector.broadcast %cst_9 : f32 to vector<16x128xf32>
    %11 = arith.mulf %10, %8 : vector<16x128xf32>
    %12 = arith.addf %9, %5 : vector<16x128xf32>
    %cst_10 = arith.constant 0.000000e+00 : f32
    %13 = vector.broadcast %cst_10 : f32 to vector<16x128xf32>
    %14 = arith.maximumf %12, %13 : vector<16x128xf32>
    %15 = arith.addf %11, %14 : vector<16x128xf32>
    %c1_i32 = arith.constant 1 : i32
    %cst_11 = arith.constant dense<0.000000e+00> : vector<16x128xf32>
    %16 = tpu.matmul %6, %15, %cst_11 {dimension_numbers = #tpu.dot_dimension_numbers<[1], [0], [0], [1], [0, 0, 1, 1], [], []>} : vector<16x16xf32>, vector<16x128xf32>, vector<16x128xf32> -> vector<16x128xf32>
    %cst_12 = arith.constant 2.000000e-01 : f32
    %17 = vector.broadcast %cst_12 : f32 to vector<16x128xf32>
    %18 = arith.mulf %17, %15 : vector<16x128xf32>
    %19 = arith.addf %16, %5 : vector<16x128xf32>
    %cst_13 = arith.constant 0.000000e+00 : f32
    %20 = vector.broadcast %cst_13 : f32 to vector<16x128xf32>
    %21 = arith.maximumf %19, %20 : vector<16x128xf32>
    %22 = arith.addf %18, %21 : vector<16x128xf32>
    %c2_i32 = arith.constant 2 : i32
    %cst_14 = arith.constant dense<0.000000e+00> : vector<16x128xf32>
    %23 = tpu.matmul %6, %22, %cst_14 {dimension_numbers = #tpu.dot_dimension_numbers<[1], [0], [0], [1], [0, 0, 1, 1], [], []>} : vector<16x16xf32>, vector<16x128xf32>, vector<16x128xf32> -> vector<16x128xf32>
    %cst_15 = arith.constant 2.000000e-01 : f32
    %24 = vector.broadcast %cst_15 : f32 to vector<16x128xf32>
    %25 = arith.mulf %24, %22 : vector<16x128xf32>
    %26 = arith.addf %23, %5 : vector<16x128xf32>
    %cst_16 = arith.constant 0.000000e+00 : f32
    %27 = vector.broadcast %cst_16 : f32 to vector<16x128xf32>
    %28 = arith.maximumf %26, %27 : vector<16x128xf32>
    %29 = arith.addf %25, %28 : vector<16x128xf32>
    %c3_i32 = arith.constant 3 : i32
    %cst_17 = arith.constant dense<0.000000e+00> : vector<16x128xf32>
    %30 = tpu.matmul %6, %29, %cst_17 {dimension_numbers = #tpu.dot_dimension_numbers<[1], [0], [0], [1], [0, 0, 1, 1], [], []>} : vector<16x16xf32>, vector<16x128xf32>, vector<16x128xf32> -> vector<16x128xf32>
    %cst_18 = arith.constant 2.000000e-01 : f32
    %31 = vector.broadcast %cst_18 : f32 to vector<16x128xf32>
    %32 = arith.mulf %31, %29 : vector<16x128xf32>
    %33 = arith.addf %30, %5 : vector<16x128xf32>
    %cst_19 = arith.constant 0.000000e+00 : f32
    %34 = vector.broadcast %cst_19 : f32 to vector<16x128xf32>
    %35 = arith.maximumf %33, %34 : vector<16x128xf32>
    %36 = arith.addf %32, %35 : vector<16x128xf32>
    %c4_i32 = arith.constant 4 : i32
    %cst_20 = arith.constant dense<0.000000e+00> : vector<16x128xf32>
    %37 = tpu.matmul %6, %36, %cst_20 {dimension_numbers = #tpu.dot_dimension_numbers<[1], [0], [0], [1], [0, 0, 1, 1], [], []>} : vector<16x16xf32>, vector<16x128xf32>, vector<16x128xf32> -> vector<16x128xf32>
    %cst_21 = arith.constant 2.000000e-01 : f32
    %38 = vector.broadcast %cst_21 : f32 to vector<16x128xf32>
    %39 = arith.mulf %38, %36 : vector<16x128xf32>
    %40 = arith.addf %37, %5 : vector<16x128xf32>
    %cst_22 = arith.constant 0.000000e+00 : f32
    %41 = vector.broadcast %cst_22 : f32 to vector<16x128xf32>
    %42 = arith.maximumf %40, %41 : vector<16x128xf32>
    %43 = arith.addf %39, %42 : vector<16x128xf32>
    %c5_i32 = arith.constant 5 : i32
    %cst_23 = arith.constant dense<0.000000e+00> : vector<16x128xf32>
    %44 = tpu.matmul %6, %43, %cst_23 {dimension_numbers = #tpu.dot_dimension_numbers<[1], [0], [0], [1], [0, 0, 1, 1], [], []>} : vector<16x16xf32>, vector<16x128xf32>, vector<16x128xf32> -> vector<16x128xf32>
    %cst_24 = arith.constant 2.000000e-01 : f32
    %45 = vector.broadcast %cst_24 : f32 to vector<16x128xf32>
    %46 = arith.mulf %45, %43 : vector<16x128xf32>
    %47 = arith.addf %44, %5 : vector<16x128xf32>
    %cst_25 = arith.constant 0.000000e+00 : f32
    %48 = vector.broadcast %cst_25 : f32 to vector<16x128xf32>
    %49 = arith.maximumf %47, %48 : vector<16x128xf32>
    %50 = arith.addf %46, %49 : vector<16x128xf32>
    %c6_i32 = arith.constant 6 : i32
    %cst_26 = arith.constant dense<0.000000e+00> : vector<16x128xf32>
    %51 = tpu.matmul %6, %50, %cst_26 {dimension_numbers = #tpu.dot_dimension_numbers<[1], [0], [0], [1], [0, 0, 1, 1], [], []>} : vector<16x16xf32>, vector<16x128xf32>, vector<16x128xf32> -> vector<16x128xf32>
    %cst_27 = arith.constant 2.000000e-01 : f32
    %52 = vector.broadcast %cst_27 : f32 to vector<16x128xf32>
    %53 = arith.mulf %52, %50 : vector<16x128xf32>
    %54 = arith.addf %51, %5 : vector<16x128xf32>
    %cst_28 = arith.constant 0.000000e+00 : f32
    %55 = vector.broadcast %cst_28 : f32 to vector<16x128xf32>
    %56 = arith.maximumf %54, %55 : vector<16x128xf32>
    %57 = arith.addf %53, %56 : vector<16x128xf32>
    %c7_i32 = arith.constant 7 : i32
    %cst_29 = arith.constant dense<0.000000e+00> : vector<16x128xf32>
    %58 = tpu.matmul %6, %57, %cst_29 {dimension_numbers = #tpu.dot_dimension_numbers<[1], [0], [0], [1], [0, 0, 1, 1], [], []>} : vector<16x16xf32>, vector<16x128xf32>, vector<16x128xf32> -> vector<16x128xf32>
    %cst_30 = arith.constant 2.000000e-01 : f32
    %59 = vector.broadcast %cst_30 : f32 to vector<16x128xf32>
    %60 = arith.mulf %59, %57 : vector<16x128xf32>
    %61 = arith.addf %58, %5 : vector<16x128xf32>
    %cst_31 = arith.constant 0.000000e+00 : f32
    %62 = vector.broadcast %cst_31 : f32 to vector<16x128xf32>
    %63 = arith.maximumf %61, %62 : vector<16x128xf32>
    %64 = arith.addf %60, %63 : vector<16x128xf32>
    %c8_i32 = arith.constant 8 : i32
    %cst_32 = arith.constant dense<0.000000e+00> : vector<16x128xf32>
    %65 = tpu.matmul %6, %64, %cst_32 {dimension_numbers = #tpu.dot_dimension_numbers<[1], [0], [0], [1], [0, 0, 1, 1], [], []>} : vector<16x16xf32>, vector<16x128xf32>, vector<16x128xf32> -> vector<16x128xf32>
    %cst_33 = arith.constant 2.000000e-01 : f32
    %66 = vector.broadcast %cst_33 : f32 to vector<16x128xf32>
    %67 = arith.mulf %66, %64 : vector<16x128xf32>
    %68 = arith.addf %65, %5 : vector<16x128xf32>
    %cst_34 = arith.constant 0.000000e+00 : f32
    %69 = vector.broadcast %cst_34 : f32 to vector<16x128xf32>
    %70 = arith.maximumf %68, %69 : vector<16x128xf32>
    %71 = arith.addf %67, %70 : vector<16x128xf32>
    %c9_i32 = arith.constant 9 : i32
    %cst_35 = arith.constant dense<0.000000e+00> : vector<16x128xf32>
    %72 = tpu.matmul %6, %71, %cst_35 {dimension_numbers = #tpu.dot_dimension_numbers<[1], [0], [0], [1], [0, 0, 1, 1], [], []>} : vector<16x16xf32>, vector<16x128xf32>, vector<16x128xf32> -> vector<16x128xf32>
    %cst_36 = arith.constant 2.000000e-01 : f32
    %73 = vector.broadcast %cst_36 : f32 to vector<16x128xf32>
    %74 = arith.mulf %73, %71 : vector<16x128xf32>
    %75 = arith.addf %72, %5 : vector<16x128xf32>
    %cst_37 = arith.constant 0.000000e+00 : f32
    %76 = vector.broadcast %cst_37 : f32 to vector<16x128xf32>
    %77 = arith.maximumf %75, %76 : vector<16x128xf32>
    %78 = arith.addf %74, %77 : vector<16x128xf32>
    %c10_i32 = arith.constant 10 : i32
    %cst_38 = arith.constant dense<0.000000e+00> : vector<16x128xf32>
    %79 = tpu.matmul %6, %78, %cst_38 {dimension_numbers = #tpu.dot_dimension_numbers<[1], [0], [0], [1], [0, 0, 1, 1], [], []>} : vector<16x16xf32>, vector<16x128xf32>, vector<16x128xf32> -> vector<16x128xf32>
    %cst_39 = arith.constant 2.000000e-01 : f32
    %80 = vector.broadcast %cst_39 : f32 to vector<16x128xf32>
    %81 = arith.mulf %80, %78 : vector<16x128xf32>
    %82 = arith.addf %79, %5 : vector<16x128xf32>
    %cst_40 = arith.constant 0.000000e+00 : f32
    %83 = vector.broadcast %cst_40 : f32 to vector<16x128xf32>
    %84 = arith.maximumf %82, %83 : vector<16x128xf32>
    %85 = arith.addf %81, %84 : vector<16x128xf32>
    %c11_i32 = arith.constant 11 : i32
    %cst_41 = arith.constant dense<0.000000e+00> : vector<16x128xf32>
    %86 = tpu.matmul %6, %85, %cst_41 {dimension_numbers = #tpu.dot_dimension_numbers<[1], [0], [0], [1], [0, 0, 1, 1], [], []>} : vector<16x16xf32>, vector<16x128xf32>, vector<16x128xf32> -> vector<16x128xf32>
    %cst_42 = arith.constant 2.000000e-01 : f32
    %87 = vector.broadcast %cst_42 : f32 to vector<16x128xf32>
    %88 = arith.mulf %87, %85 : vector<16x128xf32>
    %89 = arith.addf %86, %5 : vector<16x128xf32>
    %cst_43 = arith.constant 0.000000e+00 : f32
    %90 = vector.broadcast %cst_43 : f32 to vector<16x128xf32>
    %91 = arith.maximumf %89, %90 : vector<16x128xf32>
    %92 = arith.addf %88, %91 : vector<16x128xf32>
    %c12_i32 = arith.constant 12 : i32
    %cst_44 = arith.constant dense<0.000000e+00> : vector<16x128xf32>
    %93 = tpu.matmul %6, %92, %cst_44 {dimension_numbers = #tpu.dot_dimension_numbers<[1], [0], [0], [1], [0, 0, 1, 1], [], []>} : vector<16x16xf32>, vector<16x128xf32>, vector<16x128xf32> -> vector<16x128xf32>
    %cst_45 = arith.constant 2.000000e-01 : f32
    %94 = vector.broadcast %cst_45 : f32 to vector<16x128xf32>
    %95 = arith.mulf %94, %92 : vector<16x128xf32>
    %96 = arith.addf %93, %5 : vector<16x128xf32>
    %cst_46 = arith.constant 0.000000e+00 : f32
    %97 = vector.broadcast %cst_46 : f32 to vector<16x128xf32>
    %98 = arith.maximumf %96, %97 : vector<16x128xf32>
    %99 = arith.addf %95, %98 : vector<16x128xf32>
    %c13_i32 = arith.constant 13 : i32
    %cst_47 = arith.constant dense<0.000000e+00> : vector<16x128xf32>
    %100 = tpu.matmul %6, %99, %cst_47 {dimension_numbers = #tpu.dot_dimension_numbers<[1], [0], [0], [1], [0, 0, 1, 1], [], []>} : vector<16x16xf32>, vector<16x128xf32>, vector<16x128xf32> -> vector<16x128xf32>
    %cst_48 = arith.constant 2.000000e-01 : f32
    %101 = vector.broadcast %cst_48 : f32 to vector<16x128xf32>
    %102 = arith.mulf %101, %99 : vector<16x128xf32>
    %103 = arith.addf %100, %5 : vector<16x128xf32>
    %cst_49 = arith.constant 0.000000e+00 : f32
    %104 = vector.broadcast %cst_49 : f32 to vector<16x128xf32>
    %105 = arith.maximumf %103, %104 : vector<16x128xf32>
    %106 = arith.addf %102, %105 : vector<16x128xf32>
    %c14_i32 = arith.constant 14 : i32
    %cst_50 = arith.constant dense<0.000000e+00> : vector<16x128xf32>
    %107 = tpu.matmul %6, %106, %cst_50 {dimension_numbers = #tpu.dot_dimension_numbers<[1], [0], [0], [1], [0, 0, 1, 1], [], []>} : vector<16x16xf32>, vector<16x128xf32>, vector<16x128xf32> -> vector<16x128xf32>
    %cst_51 = arith.constant 2.000000e-01 : f32
    %108 = vector.broadcast %cst_51 : f32 to vector<16x128xf32>
    %109 = arith.mulf %108, %106 : vector<16x128xf32>
    %110 = arith.addf %107, %5 : vector<16x128xf32>
    %cst_52 = arith.constant 0.000000e+00 : f32
    %111 = vector.broadcast %cst_52 : f32 to vector<16x128xf32>
    %112 = arith.maximumf %110, %111 : vector<16x128xf32>
    %113 = arith.addf %109, %112 : vector<16x128xf32>
    %c15_i32 = arith.constant 15 : i32
    %cst_53 = arith.constant dense<0.000000e+00> : vector<16x128xf32>
    %114 = tpu.matmul %6, %113, %cst_53 {dimension_numbers = #tpu.dot_dimension_numbers<[1], [0], [0], [1], [0, 0, 1, 1], [], []>} : vector<16x16xf32>, vector<16x128xf32>, vector<16x128xf32> -> vector<16x128xf32>
    %cst_54 = arith.constant 2.000000e-01 : f32
    %115 = vector.broadcast %cst_54 : f32 to vector<16x128xf32>
    %116 = arith.mulf %115, %113 : vector<16x128xf32>
    %117 = arith.addf %114, %5 : vector<16x128xf32>
    %cst_55 = arith.constant 0.000000e+00 : f32
    %118 = vector.broadcast %cst_55 : f32 to vector<16x128xf32>
    %119 = arith.maximumf %117, %118 : vector<16x128xf32>
    %120 = arith.addf %116, %119 : vector<16x128xf32>
    %c16_i32 = arith.constant 16 : i32
    %cst_56 = arith.constant dense<0.000000e+00> : vector<16x128xf32>
    %121 = tpu.matmul %6, %120, %cst_56 {dimension_numbers = #tpu.dot_dimension_numbers<[1], [0], [0], [1], [0, 0, 1, 1], [], []>} : vector<16x16xf32>, vector<16x128xf32>, vector<16x128xf32> -> vector<16x128xf32>
    %cst_57 = arith.constant 2.000000e-01 : f32
    %122 = vector.broadcast %cst_57 : f32 to vector<16x128xf32>
    %123 = arith.mulf %122, %120 : vector<16x128xf32>
    %124 = arith.addf %121, %5 : vector<16x128xf32>
    %cst_58 = arith.constant 0.000000e+00 : f32
    %125 = vector.broadcast %cst_58 : f32 to vector<16x128xf32>
    %126 = arith.maximumf %124, %125 : vector<16x128xf32>
    %127 = arith.addf %123, %126 : vector<16x128xf32>
    %c17_i32 = arith.constant 17 : i32
    %cst_59 = arith.constant dense<0.000000e+00> : vector<16x128xf32>
    %128 = tpu.matmul %6, %127, %cst_59 {dimension_numbers = #tpu.dot_dimension_numbers<[1], [0], [0], [1], [0, 0, 1, 1], [], []>} : vector<16x16xf32>, vector<16x128xf32>, vector<16x128xf32> -> vector<16x128xf32>
    %cst_60 = arith.constant 2.000000e-01 : f32
    %129 = vector.broadcast %cst_60 : f32 to vector<16x128xf32>
    %130 = arith.mulf %129, %127 : vector<16x128xf32>
    %131 = arith.addf %128, %5 : vector<16x128xf32>
    %cst_61 = arith.constant 0.000000e+00 : f32
    %132 = vector.broadcast %cst_61 : f32 to vector<16x128xf32>
    %133 = arith.maximumf %131, %132 : vector<16x128xf32>
    %134 = arith.addf %130, %133 : vector<16x128xf32>
    %c18_i32 = arith.constant 18 : i32
    %cst_62 = arith.constant dense<0.000000e+00> : vector<16x128xf32>
    %135 = tpu.matmul %6, %134, %cst_62 {dimension_numbers = #tpu.dot_dimension_numbers<[1], [0], [0], [1], [0, 0, 1, 1], [], []>} : vector<16x16xf32>, vector<16x128xf32>, vector<16x128xf32> -> vector<16x128xf32>
    %cst_63 = arith.constant 2.000000e-01 : f32
    %136 = vector.broadcast %cst_63 : f32 to vector<16x128xf32>
    %137 = arith.mulf %136, %134 : vector<16x128xf32>
    %138 = arith.addf %135, %5 : vector<16x128xf32>
    %cst_64 = arith.constant 0.000000e+00 : f32
    %139 = vector.broadcast %cst_64 : f32 to vector<16x128xf32>
    %140 = arith.maximumf %138, %139 : vector<16x128xf32>
    %141 = arith.addf %137, %140 : vector<16x128xf32>
    %cst_65 = arith.constant 0.000000e+00 : f32
    %142 = vector.broadcast %cst_65 : f32 to vector<16x128xf32>
    %143 = arith.maximumf %141, %142 : vector<16x128xf32>
    %c0_66 = arith.constant 0 : index
    %c0_67 = arith.constant 0 : index
    %144 = vector.load %arg4[%c0_66, %c0_67] : memref<128x128xf32, #tpu.memory_space<vmem>>, vector<128x128xf32>
    %cst_68 = arith.constant dense<0.000000e+00> : vector<16x128xf32>
    %145 = tpu.matmul %143, %144, %cst_68 {dimension_numbers = #tpu.dot_dimension_numbers<[1], [0], [0], [1], [0, 0, 1, 1], [], []>} : vector<16x128xf32>, vector<128x128xf32>, vector<16x128xf32> -> vector<16x128xf32>
    %c0_69 = arith.constant 0 : index
    %c0_70 = arith.constant 0 : index
    %146 = vector.load %arg5[%c0_69, %c0_70] : memref<1x128xf32, #tpu.memory_space<vmem>>, vector<1x128xf32>
    %147 = vector.broadcast %146 : vector<1x128xf32> to vector<16x128xf32>
    %148 = arith.addf %145, %147 : vector<16x128xf32>
    %c0_71 = arith.constant 0 : index
    %c0_72 = arith.constant 0 : index
    %149 = vector.load %arg6[%c0_71, %c0_72] : memref<16x128xf32, #tpu.memory_space<vmem>>, vector<16x128xf32>
    tpu.vector_store %arg6[%c0_71, %c0_72], %148 {strides = array<i32>} : memref<16x128xf32, #tpu.memory_space<vmem>>, vector<16x128xf32>,
    return
  }
}

</mosaic_0001>

<llo_original>
// kernel: tpu_custom_call.1
$region0: #{tpu_custom_call.1}
  #allocation0 [shape = 'u32[]', space=smem, size = 0x4, offset = 0x4, fixed_abs, tag = 'smem constant byte address 0x4 - core index']
  #allocation1 [shape = 'u32[144,128]{1,0:T(1,128)}', space=vmem, size = 0x12000, scoped, tag = 'internal scratch']
  %s0 = inlined_call_operand.hbm [shape: f32[16,128], index: 0, kind: input, shape index: {}]
  %s1 = inlined_call_operand.hbm [shape: f32[16,16], index: 1, kind: input, shape index: {}]
  %s2 = inlined_call_operand.hbm [shape: f32[128,128], index: 2, kind: input, shape index: {}]
  %s3 = inlined_call_operand.vmem [shape: f32[1,128], index: 3, kind: input, shape index: {}]
  %s4 = inlined_call_operand.hbm [shape: f32[128,128], index: 4, kind: input, shape index: {}]
  %s5 = inlined_call_operand.vmem [shape: f32[1,128], index: 5, kind: input, shape index: {}]
  %s6 = inlined_call_operand.hbm [shape: f32[16,128], index: 6, kind: output, shape index: {}]
  %s7 = sld [smem:[#allocation0]]
  $region50: #{tpu_custom_call.1} parent=0
    _
  %s9 = ssub.s32 1, %s7
  %s10 = scalar_select 0, %s9, %s7
  $region1: #{tpu_custom_call.1} parent=0
    #allocation2 [shape = 'u8[8192]{0}', space=vmem, size = 0x2000, scoped, tag = 'input window, operand 0, single buffered']
    #allocation3 [shape = 's32[1]{0}', space=sflag, size = 0x4, scoped, tag = 'scoped memory for tpu_custom_call.1']
    #allocation4 [shape = 's32[1]{0}', space=sflag, size = 0x4, scoped, tag = 'scoped memory for tpu_custom_call.1']
    #allocation5 [shape = 'u8[8192]{0}', space=vmem, size = 0x2000, scoped, tag = 'input window, operand 1, single buffered']
    #allocation6 [shape = 's32[1]{0}', space=sflag, size = 0x4, scoped, tag = 'scoped memory for tpu_custom_call.1']
    #allocation7 [shape = 'u8[65536]{0}', space=vmem, size = 0x10000, scoped, tag = 'input window, operand 2, single buffered']
    #allocation8 [shape = 'u8[65536]{0}', space=vmem, size = 0x10000, scoped, tag = 'input window, operand 4, single buffered']
    #allocation9 [shape = 's32[1]{0}', space=sflag, size = 0x4, scoped, tag = 'scoped memory for tpu_custom_call.1']
    #allocation10 [shape = 'u8[8192]{0}', space=vmem, size = 0x2000, scoped, tag = 'output window, operand 0, single buffered']
    %11 = vsyncpa [#allocation3], 0
    %12 = vsyncpa [#allocation6], 0
    %13 = vsyncpa [#allocation9], 0
    %14 = vsyncpa [#allocation4], 0
    // Predicated region
    $region2: #{tpu_custom_call.1} parent=1 // pred_check
      _
    $region3: #{tpu_custom_call.1} parent=1 // pred_check_branch
      %16 = sbr.rel (0) target = $region5
    $region4: #{tpu_custom_call.1} parent=1 // pred_region
      %s18 = ssub.s32 256, 256
      %19 = vsyncadd [#allocation3], %s18
      %s20 = sshll.u32 [#allocation2], 4
      %s21 = int_to_ptr.vmem [resolvable:$true] %s20
      %26 = dma.hbm_to_vmem [thread:$0]  %s0, 256, %s21, [#allocation3], 128, 128, 8
    $region5: #{tpu_custom_call.1} parent=1 // pred_fallthru
      _
    // Predicated region
    $region6: #{tpu_custom_call.1} parent=1 // pred_check
      _
    $region7: #{tpu_custom_call.1} parent=1 // pred_check_branch
      %28 = sbr.rel (0) target = $region9
    $region8: #{tpu_custom_call.1} parent=1 // pred_region
      %s30 = ssub.s32 256, 256
      %31 = vsyncadd [#allocation6], %s30
      %s32 = sshll.u32 [#allocation5], 4
      %s33 = int_to_ptr.vmem [resolvable:$true] %s32
      %38 = dma.hbm_to_vmem [thread:$0]  %s1, 256, %s33, [#allocation6], 128, 128, 8
    $region9: #{tpu_custom_call.1} parent=1 // pred_fallthru
      _
    // Predicated region
    $region10: #{tpu_custom_call.1} parent=1 // pred_check
      _
    $region11: #{tpu_custom_call.1} parent=1 // pred_check_branch
      %40 = sbr.rel (0) target = $region13
    $region12: #{tpu_custom_call.1} parent=1 // pred_region
      %s42 = ssub.s32 2048, 2048
      %43 = vsyncadd [#allocation6], %s42
      %s44 = sshll.u32 [#allocation7], 4
      %s45 = int_to_ptr.vmem [resolvable:$true] %s44
      %50 = dma.hbm_to_vmem [thread:$0]  %s2, 2048, %s45, [#allocation6], 128, 128, 8
    $region13: #{tpu_custom_call.1} parent=1 // pred_fallthru
      _
    // Predicated region
    $region14: #{tpu_custom_call.1} parent=1 // pred_check
      _
    $region15: #{tpu_custom_call.1} parent=1 // pred_check_branch
      %52 = sbr.rel (0) target = $region17
    $region16: #{tpu_custom_call.1} parent=1 // pred_region
      _
    $region17: #{tpu_custom_call.1} parent=1 // pred_fallthru
      _
    // Predicated region
    $region18: #{tpu_custom_call.1} parent=1 // pred_check
      _
    $region19: #{tpu_custom_call.1} parent=1 // pred_check_branch
      %54 = sbr.rel (0) target = $region21
    $region20: #{tpu_custom_call.1} parent=1 // pred_region
      %s56 = ssub.s32 2048, 2048
      %57 = vsyncadd [#allocation9], %s56
      %s58 = sshll.u32 [#allocation8], 4
      %s59 = int_to_ptr.vmem [resolvable:$true] %s58
      %64 = dma.hbm_to_vmem [thread:$0]  %s4, 2048, %s59, [#allocation9], 128, 128, 8
    $region21: #{tpu_custom_call.1} parent=1 // pred_fallthru
      _
    // Predicated region
    $region22: #{tpu_custom_call.1} parent=1 // pred_check
      _
    $region23: #{tpu_custom_call.1} parent=1 // pred_check_branch
      %66 = sbr.rel (0) target = $region25
    $region24: #{tpu_custom_call.1} parent=1 // pred_region
      _
    $region25: #{tpu_custom_call.1} parent=1 // pred_fallthru
      _
    // Predicated region
    $region26: #{tpu_custom_call.1} parent=1 // pred_check
      _
    $region27: #{tpu_custom_call.1} parent=1 // pred_check_branch
      %68 = sbr.rel (0) target = $region29
    $region28: #{tpu_custom_call.1} parent=1 // pred_region
      %69 = dma.done [#allocation3], 256
    $region29: #{tpu_custom_call.1} parent=1 // pred_fallthru
      _
    // Predicated region
    $region30: #{tpu_custom_call.1} parent=1 // pred_check
      _
    $region31: #{tpu_custom_call.1} parent=1 // pred_check_branch
      %71 = sbr.rel (0) target = $region33
    $region32: #{tpu_custom_call.1} parent=1 // pred_region
      %72 = dma.done [#allocation6], 256
    $region33: #{tpu_custom_call.1} parent=1 // pred_fallthru
      _
    // Predicated region
    $region34: #{tpu_custom_call.1} parent=1 // pred_check
      _
    $region35: #{tpu_custom_call.1} parent=1 // pred_check_branch
      %74 = sbr.rel (0) target = $region37
    $region36: #{tpu_custom_call.1} parent=1 // pred_region
      %75 = dma.done [#allocation6], 2048
    $region37: #{tpu_custom_call.1} parent=1 // pred_fallthru
      _
    // Predicated region
    $region38: #{tpu_custom_call.1} parent=1 // pred_check
      _
    $region39: #{tpu_custom_call.1} parent=1 // pred_check_branch
      %77 = sbr.rel (0) target = $region41
    $region40: #{tpu_custom_call.1} parent=1 // pred_region
      %78 = dma.done [#allocation9], 2048
    $region41: #{tpu_custom_call.1} parent=1 // pred_fallthru
      _
    %v79 = vld [vmem:[#allocation2] sm:$0xff]
    %v80 = vld [vmem:[#allocation2 + $0x8] sm:$0xff]
    %v81 = vld [vmem:[#allocation7] sm:$0xff]
    %v82 = vld [vmem:[#allocation7 + $0x8] sm:$0xff]
    %v83 = vld [vmem:[#allocation7 + $0x10] sm:$0xff]
    %v84 = vld [vmem:[#allocation7 + $0x18] sm:$0xff]
    %v85 = vld [vmem:[#allocation7 + $0x20] sm:$0xff]
    %v86 = vld [vmem:[#allocation7 + $0x28] sm:$0xff]
    %v87 = vld [vmem:[#allocation7 + $0x30] sm:$0xff]
    %v88 = vld [vmem:[#allocation7 + $0x38] sm:$0xff]
    %v89 = vld [vmem:[#allocation7 + $0x40] sm:$0xff]
    %v90 = vld [vmem:[#allocation7 + $0x48] sm:$0xff]
    %v91 = vld [vmem:[#allocation7 + $0x50] sm:$0xff]
    %v92 = vld [vmem:[#allocation7 + $0x58] sm:$0xff]
    %v93 = vld [vmem:[#allocation7 + $0x60] sm:$0xff]
    %v94 = vld [vmem:[#allocation7 + $0x68] sm:$0xff]
    %v95 = vld [vmem:[#allocation7 + $0x70] sm:$0xff]
    %v96 = vld [vmem:[#allocation7 + $0x78] sm:$0xff]
    %v97 = vld [vmem:[%s3] sm:$0x1]
    %v99 = vlaneseq
    %v100 = vshrl.u32 %v99, 7
    %v101 = vsub.s32 0, %v100
    %v102 = vrot.slane %v97, %v101
    %104 = vmatprep.subr.mxu0 0.0
    %105 = vmatpush1.msra.mxu0 %v81
    %106 = vmatprep.subr.mxu0 0.0
    %107 = vmatpush1.msra.mxu0 %v82
    %108 = vmatprep.subr.mxu0 0.0
    %109 = vmatpush1.msra.mxu0 %v83
    %110 = vmatprep.subr.mxu0 0.0
    %111 = vmatpush1.msra.mxu0 %v84
    %112 = vmatprep.subr.mxu0 0.0
    %113 = vmatpush1.msra.mxu0 %v85
    %114 = vmatprep.subr.mxu0 0.0
    %115 = vmatpush1.msra.mxu0 %v86
    %116 = vmatprep.subr.mxu0 0.0
    %117 = vmatpush1.msra.mxu0 %v87
    %118 = vmatprep.subr.mxu0 0.0
    %119 = vmatpush1.msra.mxu0 %v88
    %120 = vmatprep.subr.mxu0 0.0
    %121 = vmatpush1.msra.mxu0 %v89
    %122 = vmatprep.subr.mxu0 0.0
    %123 = vmatpush1.msra.mxu0 %v90
    %124 = vmatprep.subr.mxu0 0.0
    %125 = vmatpush1.msra.mxu0 %v91
    %126 = vmatprep.subr.mxu0 0.0
    %127 = vmatpush1.msra.mxu0 %v92
    %128 = vmatprep.subr.mxu0 0.0
    %129 = vmatpush1.msra.mxu0 %v93
    %130 = vmatprep.subr.mxu0 0.0
    %131 = vmatpush1.msra.mxu0 %v94
    %132 = vmatprep.subr.mxu0 0.0
    %133 = vmatpush1.msra.mxu0 %v95
    %134 = vmatprep.subr.mxu0 0.0
    %135 = vmatpush1.msra.mxu0 %v96
    %136 = vmatprep.subr.mxu0 0.0
    %137 = vmatpush1.msra.mxu0 0.0
    %138 = vmatprep.subr.mxu0 0.0
    %139 = vmatpush1.msra.mxu0 0.0
    %140 = vmatprep.subr.mxu0 0.0
    %141 = vmatpush1.msra.mxu0 0.0
    %142 = vmatprep.subr.mxu0 0.0
    %143 = vmatpush1.msra.mxu0 0.0
    %144 = vmatprep.subr.mxu0 0.0
    %145 = vmatpush1.msra.mxu0 0.0
    %146 = vmatprep.subr.mxu0 0.0
    %147 = vmatpush1.msra.mxu0 0.0
    %148 = vmatprep.subr.mxu0 0.0
    %149 = vmatpush1.msra.mxu0 0.0
    %150 = vmatprep.subr.mxu0 0.0
    %151 = vmatpush1.msra.mxu0 0.0
    %152 = vmatprep.subr.mxu0 0.0
    %153 = vmatpush1.msra.mxu0 0.0
    %154 = vmatprep.subr.mxu0 0.0
    %155 = vmatpush1.msra.mxu0 0.0
    %156 = vmatprep.subr.mxu0 0.0
    %157 = vmatpush1.msra.mxu0 0.0
    %158 = vmatprep.subr.mxu0 0.0
    %159 = vmatpush1.msra.mxu0 0.0
    %160 = vmatprep.subr.mxu0 0.0
    %161 = vmatpush1.msra.mxu0 0.0
    %162 = vmatprep.subr.mxu0 0.0
    %163 = vmatpush1.msra.mxu0 0.0
    %164 = vmatprep.subr.mxu0 0.0
    %165 = vmatpush1.msra.mxu0 0.0
    %166 = vmatprep.subr.mxu0 0.0
    %167 = vmatpush1.msra.mxu0 0.0
    %168 = vmatprep.mubr.f32.mxu0 0.0
    %169 = vmatmul.mubr.f32.gmra.mrb[0].mxu0 %v79
    %v170 = vpop.f32.mrb[0].mxu0
    %v171 = vadd.f32 %v102, %v170
    %v172 = vpop.f32.mrb[0].mxu0
    %173 = vmatprep.mubr.f32.mxu0 0.0
    %174 = vmatmul.mubr.f32.gmra.mrb[0].mxu0 %v80
    %v175 = vpop.f32.mrb[0].mxu0
    %v176 = vadd.f32 %v102, %v175
    %v177 = vpop.f32.mrb[0].mxu0
    %178 = vdwg.mxu0
    %v179 = vld [vmem:[#allocation5] sm:$0xff]
    %v180 = vld [vmem:[#allocation5 + $0x8] sm:$0xff]
    %v181 = vmax.f32 %v171, 0.0
    %v182 = vmax.f32 %v176, 0.0
    %v183 = vmul.f32 %v181, 0.2
    %v184 = vmul.f32 %v182, 0.2
    %vm185 = vcmask 130048
    %v187 = vsel %vm185, %v179, 0
    %v190 = vsel %vm185, %v180, 0
    %192 = vmatprep.subr.mxu0 0.0
    %193 = vmatpush1.msra.mxu0 %v181
    %194 = vmatprep.subr.mxu0 0.0
    %195 = vmatpush1.msra.mxu0 %v182
    %196 = vmatprep.subr.mxu0 0.0
    %197 = vmatpush1.msra.mxu0 0.0
    %198 = vmatprep.subr.mxu0 0.0
    %199 = vmatpush1.msra.mxu0 0.0
    %200 = vmatprep.subr.mxu0 0.0
    %201 = vmatpush1.msra.mxu0 0.0
    %202 = vmatprep.subr.mxu0 0.0
    %203 = vmatpush1.msra.mxu0 0.0
    %204 = vmatprep.subr.mxu0 0.0
    %205 = vmatpush1.msra.mxu0 0.0
    %206 = vmatprep.subr.mxu0 0.0
    %207 = vmatpush1.msra.mxu0 0.0
    %208 = vmatprep.subr.mxu0 0.0
    %209 = vmatpush1.msra.mxu0 0.0
    %210 = vmatprep.subr.mxu0 0.0
    %211 = vmatpush1.msra.mxu0 0.0
    %212 = vmatprep.subr.mxu0 0.0
    %213 = vmatpush1.msra.mxu0 0.0
    %214 = vmatprep.subr.mxu0 0.0
    %215 = vmatpush1.msra.mxu0 0.0
    %216 = vmatprep.subr.mxu0 0.0
    %217 = vmatpush1.msra.mxu0 0.0
    %218 = vmatprep.subr.mxu0 0.0
    %219 = vmatpush1.msra.mxu0 0.0
    %220 = vmatprep.subr.mxu0 0.0
    %221 = vmatpush1.msra.mxu0 0.0
    %222 = vmatprep.subr.mxu0 0.0
    %223 = vmatpush1.msra.mxu0 0.0
    %224 = vmatprep.subr.mxu0 0.0
    %225 = vmatpush1.msra.mxu0 0.0
    %226 = vmatprep.subr.mxu0 0.0
    %227 = vmatpush1.msra.mxu0 0.0
    %228 = vmatprep.subr.mxu0 0.0
    %229 = vmatpush1.msra.mxu0 0.0
    %230 = vmatprep.subr.mxu0 0.0
    %231 = vmatpush1.msra.mxu0 0.0
    %232 = vmatprep.subr.mxu0 0.0
    %233 = vmatpush1.msra.mxu0 0.0
    %234 = vmatprep.subr.mxu0 0.0
    %235 = vmatpush1.msra.mxu0 0.0
    %236 = vmatprep.subr.mxu0 0.0
    %237 = vmatpush1.msra.mxu0 0.0
    %238 = vmatprep.subr.mxu0 0.0
    %239 = vmatpush1.msra.mxu0 0.0
    %240 = vmatprep.subr.mxu0 0.0
    %241 = vmatpush1.msra.mxu0 0.0
    %242 = vmatprep.subr.mxu0 0.0
    %243 = vmatpush1.msra.mxu0 0.0
    %244 = vmatprep.subr.mxu0 0.0
    %245 = vmatpush1.msra.mxu0 0.0
    %246 = vmatprep.subr.mxu0 0.0
    %247 = vmatpush1.msra.mxu0 0.0
    %248 = vmatprep.subr.mxu0 0.0
    %249 = vmatpush1.msra.mxu0 0.0
    %250 = vmatprep.subr.mxu0 0.0
    %251 = vmatpush1.msra.mxu0 0.0
    %252 = vmatprep.subr.mxu0 0.0
    %253 = vmatpush1.msra.mxu0 0.0
    %254 = vmatprep.subr.mxu0 0.0
    %255 = vmatpush1.msra.mxu0 0.0
    %256 = vmatprep.mubr.f32.mxu0 0.0
    %257 = vmatmul.mubr.f32.gmra.mrb[0].mxu0 %v187
    %v258 = vpop.f32.mrb[0].mxu0
    %v259 = vadd.f32 %v171, %v258
    %v260 = vpop.f32.mrb[0].mxu0
    %261 = vmatprep.mubr.f32.mxu0 0.0
    %262 = vmatmul.mubr.f32.gmra.mrb[0].mxu0 %v190
    %v263 = vpop.f32.mrb[0].mxu0
    %v264 = vadd.f32 %v176, %v263
    %v265 = vpop.f32.mrb[0].mxu0
    %266 = vdwg.mxu0
    %v267 = vmax.f32 %v259, 0.0
    %v268 = vmax.f32 %v264, 0.0
    %v269 = vadd.f32 %v183, %v267
    %v270 = vadd.f32 %v184, %v268
    %v271 = vmul.f32 %v269, 0.2
    %v272 = vmul.f32 %v270, 0.2
    %273 = vmatprep.subr.mxu0 0.0
    %274 = vmatpush1.msra.mxu0 %v269
    %275 = vmatprep.subr.mxu0 0.0
    %276 = vmatpush1.msra.mxu0 %v270
    %277 = vmatprep.subr.mxu0 0.0
    %278 = vmatpush1.msra.mxu0 0.0
    %279 = vmatprep.subr.mxu0 0.0
    %280 = vmatpush1.msra.mxu0 0.0
    %281 = vmatprep.subr.mxu0 0.0
    %282 = vmatpush1.msra.mxu0 0.0
    %283 = vmatprep.subr.mxu0 0.0
    %284 = vmatpush1.msra.mxu0 0.0
    %285 = vmatprep.subr.mxu0 0.0
    %286 = vmatpush1.msra.mxu0 0.0
    %287 = vmatprep.subr.mxu0 0.0
    %288 = vmatpush1.msra.mxu0 0.0
    %289 = vmatprep.subr.mxu0 0.0
    %290 = vmatpush1.msra.mxu0 0.0
    %291 = vmatprep.subr.mxu0 0.0
    %292 = vmatpush1.msra.mxu0 0.0
    %293 = vmatprep.subr.mxu0 0.0
    %294 = vmatpush1.msra.mxu0 0.0
    %295 = vmatprep.subr.mxu0 0.0
    %296 = vmatpush1.msra.mxu0 0.0
    %297 = vmatprep.subr.mxu0 0.0
    %298 = vmatpush1.msra.mxu0 0.0
    %299 = vmatprep.subr.mxu0 0.0
    %300 = vmatpush1.msra.mxu0 0.0
    %301 = vmatprep.subr.mxu0 0.0
    %302 = vmatpush1.msra.mxu0 0.0
    %303 = vmatprep.subr.mxu0 0.0
    %304 = vmatpush1.msra.mxu0 0.0
    %305 = vmatprep.subr.mxu0 0.0
    %306 = vmatpush1.msra.mxu0 0.0
    %307 = vmatprep.subr.mxu0 0.0
    %308 = vmatpush1.msra.mxu0 0.0
    %309 = vmatprep.subr.mxu0 0.0
    %310 = vmatpush1.msra.mxu0 0.0
    %311 = vmatprep.subr.mxu0 0.0
    %312 = vmatpush1.msra.mxu0 0.0
    %313 = vmatprep.subr.mxu0 0.0
    %314 = vmatpush1.msra.mxu0 0.0
    %315 = vmatprep.subr.mxu0 0.0
    %316 = vmatpush1.msra.mxu0 0.0
    %317 = vmatprep.subr.mxu0 0.0
    %318 = vmatpush1.msra.mxu0 0.0
    %319 = vmatprep.subr.mxu0 0.0
    %320 = vmatpush1.msra.mxu0 0.0
    %321 = vmatprep.subr.mxu0 0.0
    %322 = vmatpush1.msra.mxu0 0.0
    %323 = vmatprep.subr.mxu0 0.0
    %324 = vmatpush1.msra.mxu0 0.0
    %325 = vmatprep.subr.mxu0 0.0
    %326 = vmatpush1.msra.mxu0 0.0
    %327 = vmatprep.subr.mxu0 0.0
    %328 = vmatpush1.msra.mxu0 0.0
    %329 = vmatprep.subr.mxu0 0.0
    %330 = vmatpush1.msra.mxu0 0.0
    %331 = vmatprep.subr.mxu0 0.0
    %332 = vmatpush1.msra.mxu0 0.0
    %333 = vmatprep.subr.mxu0 0.0
    %334 = vmatpush1.msra.mxu0 0.0
    %335 = vmatprep.subr.mxu0 0.0
    %336 = vmatpush1.msra.mxu0 0.0
    %337 = vmatprep.mubr.f32.mxu0 0.0
    %338 = vmatmul.mubr.f32.gmra.mrb[0].mxu0 %v187
    %v339 = vpop.f32.mrb[0].mxu0
    %v340 = vadd.f32 %v171, %v339
    %v341 = vpop.f32.mrb[0].mxu0
    %342 = vmatprep.mubr.f32.mxu0 0.0
    %343 = vmatmul.mubr.f32.gmra.mrb[0].mxu0 %v190
    %v344 = vpop.f32.mrb[0].mxu0
    %v345 = vadd.f32 %v176, %v344
    %v346 = vpop.f32.mrb[0].mxu0
    %347 = vdwg.mxu0
    %v348 = vmax.f32 %v340, 0.0
    %v349 = vmax.f32 %v345, 0.0
    %v350 = vadd.f32 %v271, %v348
    %v351 = vadd.f32 %v272, %v349
    %v352 = vmul.f32 %v350, 0.2
    %v353 = vmul.f32 %v351, 0.2
    %354 = vmatprep.subr.mxu0 0.0
    %355 = vmatpush1.msra.mxu0 %v350
    %356 = vmatprep.subr.mxu0 0.0
    %357 = vmatpush1.msra.mxu0 %v351
    %358 = vmatprep.subr.mxu0 0.0
    %359 = vmatpush1.msra.mxu0 0.0
    %360 = vmatprep.subr.mxu0 0.0
    %361 = vmatpush1.msra.mxu0 0.0
    %362 = vmatprep.subr.mxu0 0.0
    %363 = vmatpush1.msra.mxu0 0.0
    %364 = vmatprep.subr.mxu0 0.0
    %365 = vmatpush1.msra.mxu0 0.0
    %366 = vmatprep.subr.mxu0 0.0
    %367 = vmatpush1.msra.mxu0 0.0
    %368 = vmatprep.subr.mxu0 0.0
    %369 = vmatpush1.msra.mxu0 0.0
    %370 = vmatprep.subr.mxu0 0.0
    %371 = vmatpush1.msra.mxu0 0.0
    %372 = vmatprep.subr.mxu0 0.0
    %373 = vmatpush1.msra.mxu0 0.0
    %374 = vmatprep.subr.mxu0 0.0
    %375 = vmatpush1.msra.mxu0 0.0
    %376 = vmatprep.subr.mxu0 0.0
    %377 = vmatpush1.msra.mxu0 0.0
    %378 = vmatprep.subr.mxu0 0.0
    %379 = vmatpush1.msra.mxu0 0.0
    %380 = vmatprep.subr.mxu0 0.0
    %381 = vmatpush1.msra.mxu0 0.0
    %382 = vmatprep.subr.mxu0 0.0
    %383 = vmatpush1.msra.mxu0 0.0
    %384 = vmatprep.subr.mxu0 0.0
    %385 = vmatpush1.msra.mxu0 0.0
    %386 = vmatprep.subr.mxu0 0.0
    %387 = vmatpush1.msra.mxu0 0.0
    %388 = vmatprep.subr.mxu0 0.0
    %389 = vmatpush1.msra.mxu0 0.0
    %390 = vmatprep.subr.mxu0 0.0
    %391 = vmatpush1.msra.mxu0 0.0
    %392 = vmatprep.subr.mxu0 0.0
    %393 = vmatpush1.msra.mxu0 0.0
    %394 = vmatprep.subr.mxu0 0.0
    %395 = vmatpush1.msra.mxu0 0.0
    %396 = vmatprep.subr.mxu0 0.0
    %397 = vmatpush1.msra.mxu0 0.0
    %398 = vmatprep.subr.mxu0 0.0
    %399 = vmatpush1.msra.mxu0 0.0
    %400 = vmatprep.subr.mxu0 0.0
    %401 = vmatpush1.msra.mxu0 0.0
    %402 = vmatprep.subr.mxu0 0.0
    %403 = vmatpush1.msra.mxu0 0.0
    %404 = vmatprep.subr.mxu0 0.0
    %405 = vmatpush1.msra.mxu0 0.0
    %406 = vmatprep.subr.mxu0 0.0
    %407 = vmatpush1.msra.mxu0 0.0
    %408 = vmatprep.subr.mxu0 0.0
    %409 = vmatpush1.msra.mxu0 0.0
    %410 = vmatprep.subr.mxu0 0.0
    %411 = vmatpush1.msra.mxu0 0.0
    %412 = vmatprep.subr.mxu0 0.0
    %413 = vmatpush1.msra.mxu0 0.0
    %414 = vmatprep.subr.mxu0 0.0
    %415 = vmatpush1.msra.mxu0 0.0
    %416 = vmatprep.subr.mxu0 0.0
    %417 = vmatpush1.msra.mxu0 0.0
    %418 = vmatprep.mubr.f32.mxu0 0.0
    %419 = vmatmul.mubr.f32.gmra.mrb[0].mxu0 %v187
    %v420 = vpop.f32.mrb[0].mxu0
    %v421 = vadd.f32 %v171, %v420
    %v422 = vpop.f32.mrb[0].mxu0
    %423 = vmatprep.mubr.f32.mxu0 0.0
    %424 = vmatmul.mubr.f32.gmra.mrb[0].mxu0 %v190
    %v425 = vpop.f32.mrb[0].mxu0
    %v426 = vadd.f32 %v176, %v425
    %v427 = vpop.f32.mrb[0].mxu0
    %428 = vdwg.mxu0
    %v429 = vmax.f32 %v421, 0.0
    %v430 = vmax.f32 %v426, 0.0
    %v431 = vadd.f32 %v352, %v429
    %v432 = vadd.f32 %v353, %v430
    %v433 = vmul.f32 %v431, 0.2
    %v434 = vmul.f32 %v432, 0.2
    %435 = vmatprep.subr.mxu0 0.0
    %436 = vmatpush1.msra.mxu0 %v431
    %437 = vmatprep.subr.mxu0 0.0
    %438 = vmatpush1.msra.mxu0 %v432
    %439 = vmatprep.subr.mxu0 0.0
    %440 = vmatpush1.msra.mxu0 0.0
    %441 = vmatprep.subr.mxu0 0.0
    %442 = vmatpush1.msra.mxu0 0.0
    %443 = vmatprep.subr.mxu0 0.0
    %444 = vmatpush1.msra.mxu0 0.0
    %445 = vmatprep.subr.mxu0 0.0
    %446 = vmatpush1.msra.mxu0 0.0
    %447 = vmatprep.subr.mxu0 0.0
    %448 = vmatpush1.msra.mxu0 0.0
    %449 = vmatprep.subr.mxu0 0.0
    %450 = vmatpush1.msra.mxu0 0.0
    %451 = vmatprep.subr.mxu0 0.0
    %452 = vmatpush1.msra.mxu0 0.0
    %453 = vmatprep.subr.mxu0 0.0
    %454 = vmatpush1.msra.mxu0 0.0
    %455 = vmatprep.subr.mxu0 0.0
    %456 = vmatpush1.msra.mxu0 0.0
    %457 = vmatprep.subr.mxu0 0.0
    %458 = vmatpush1.msra.mxu0 0.0
    %459 = vmatprep.subr.mxu0 0.0
    %460 = vmatpush1.msra.mxu0 0.0
    %461 = vmatprep.subr.mxu0 0.0
    %462 = vmatpush1.msra.mxu0 0.0
    %463 = vmatprep.subr.mxu0 0.0
    %464 = vmatpush1.msra.mxu0 0.0
    %465 = vmatprep.subr.mxu0 0.0
    %466 = vmatpush1.msra.mxu0 0.0
    %467 = vmatprep.subr.mxu0 0.0
    %468 = vmatpush1.msra.mxu0 0.0
    %469 = vmatprep.subr.mxu0 0.0
    %470 = vmatpush1.msra.mxu0 0.0
    %471 = vmatprep.subr.mxu0 0.0
    %472 = vmatpush1.msra.mxu0 0.0
    %473 = vmatprep.subr.mxu0 0.0
    %474 = vmatpush1.msra.mxu0 0.0
    %475 = vmatprep.subr.mxu0 0.0
    %476 = vmatpush1.msra.mxu0 0.0
    %477 = vmatprep.subr.mxu0 0.0
    %478 = vmatpush1.msra.mxu0 0.0
    %479 = vmatprep.subr.mxu0 0.0
    %480 = vmatpush1.msra.mxu0 0.0
    %481 = vmatprep.subr.mxu0 0.0
    %482 = vmatpush1.msra.mxu0 0.0
    %483 = vmatprep.subr.mxu0 0.0
    %484 = vmatpush1.msra.mxu0 0.0
    %485 = vmatprep.subr.mxu0 0.0
    %486 = vmatpush1.msra.mxu0 0.0
    %487 = vmatprep.subr.mxu0 0.0
    %488 = vmatpush1.msra.mxu0 0.0
    %489 = vmatprep.subr.mxu0 0.0
    %490 = vmatpush1.msra.mxu0 0.0
    %491 = vmatprep.subr.mxu0 0.0
    %492 = vmatpush1.msra.mxu0 0.0
    %493 = vmatprep.subr.mxu0 0.0
    %494 = vmatpush1.msra.mxu0 0.0
    %495 = vmatprep.subr.mxu0 0.0
    %496 = vmatpush1.msra.mxu0 0.0
    %497 = vmatprep.subr.mxu0 0.0
    %498 = vmatpush1.msra.mxu0 0.0
    %499 = vmatprep.mubr.f32.mxu0 0.0
    %500 = vmatmul.mubr.f32.gmra.mrb[0].mxu0 %v187
    %v501 = vpop.f32.mrb[0].mxu0
    %v502 = vadd.f32 %v171, %v501
    %v503 = vpop.f32.mrb[0].mxu0
    %504 = vmatprep.mubr.f32.mxu0 0.0
    %505 = vmatmul.mubr.f32.gmra.mrb[0].mxu0 %v190
    %v506 = vpop.f32.mrb[0].mxu0
    %v507 = vadd.f32 %v176, %v506
    %v508 = vpop.f32.mrb[0].mxu0
    %509 = vdwg.mxu0
    %v510 = vmax.f32 %v502, 0.0
    %v511 = vmax.f32 %v507, 0.0
    %v512 = vadd.f32 %v433, %v510
    %v513 = vadd.f32 %v434, %v511
    %v514 = vmul.f32 %v512, 0.2
    %v515 = vmul.f32 %v513, 0.2
    %516 = vmatprep.subr.mxu0 0.0
    %517 = vmatpush1.msra.mxu0 %v512
    %518 = vmatprep.subr.mxu0 0.0
    %519 = vmatpush1.msra.mxu0 %v513
    %520 = vmatprep.subr.mxu0 0.0
    %521 = vmatpush1.msra.mxu0 0.0
    %522 = vmatprep.subr.mxu0 0.0
    %523 = vmatpush1.msra.mxu0 0.0
    %524 = vmatprep.subr.mxu0 0.0
    %525 = vmatpush1.msra.mxu0 0.0
    %526 = vmatprep.subr.mxu0 0.0
    %527 = vmatpush1.msra.mxu0 0.0
    %528 = vmatprep.subr.mxu0 0.0
    %529 = vmatpush1.msra.mxu0 0.0
    %530 = vmatprep.subr.mxu0 0.0
    %531 = vmatpush1.msra.mxu0 0.0
    %532 = vmatprep.subr.mxu0 0.0
    %533 = vmatpush1.msra.mxu0 0.0
    %534 = vmatprep.subr.mxu0 0.0
    %535 = vmatpush1.msra.mxu0 0.0
    %536 = vmatprep.subr.mxu0 0.0
    %537 = vmatpush1.msra.mxu0 0.0
    %538 = vmatprep.subr.mxu0 0.0
    %539 = vmatpush1.msra.mxu0 0.0
    %540 = vmatprep.subr.mxu0 0.0
    %541 = vmatpush1.msra.mxu0 0.0
    %542 = vmatprep.subr.mxu0 0.0
    %543 = vmatpush1.msra.mxu0 0.0
    %544 = vmatprep.subr.mxu0 0.0
    %545 = vmatpush1.msra.mxu0 0.0
    %546 = vmatprep.subr.mxu0 0.0
    %547 = vmatpush1.msra.mxu0 0.0
    %548 = vmatprep.subr.mxu0 0.0
    %549 = vmatpush1.msra.mxu0 0.0
    %550 = vmatprep.subr.mxu0 0.0
    %551 = vmatpush1.msra.mxu0 0.0
    %552 = vmatprep.subr.mxu0 0.0
    %553 = vmatpush1.msra.mxu0 0.0
    %554 = vmatprep.subr.mxu0 0.0
    %555 = vmatpush1.msra.mxu0 0.0
    %556 = vmatprep.subr.mxu0 0.0
    %557 = vmatpush1.msra.mxu0 0.0
    %558 = vmatprep.subr.mxu0 0.0
    %559 = vmatpush1.msra.mxu0 0.0
    %560 = vmatprep.subr.mxu0 0.0
    %561 = vmatpush1.msra.mxu0 0.0
    %562 = vmatprep.subr.mxu0 0.0
    %563 = vmatpush1.msra.mxu0 0.0
    %564 = vmatprep.subr.mxu0 0.0
    %565 = vmatpush1.msra.mxu0 0.0
    %566 = vmatprep.subr.mxu0 0.0
    %567 = vmatpush1.msra.mxu0 0.0
    %568 = vmatprep.subr.mxu0 0.0
    %569 = vmatpush1.msra.mxu0 0.0
    %570 = vmatprep.subr.mxu0 0.0
    %571 = vmatpush1.msra.mxu0 0.0
    %572 = vmatprep.subr.mxu0 0.0
    %573 = vmatpush1.msra.mxu0 0.0
    %574 = vmatprep.subr.mxu0 0.0
    %575 = vmatpush1.msra.mxu0 0.0
    %576 = vmatprep.subr.mxu0 0.0
    %577 = vmatpush1.msra.mxu0 0.0
    %578 = vmatprep.subr.mxu0 0.0
    %579 = vmatpush1.msra.mxu0 0.0
    %580 = vmatprep.mubr.f32.mxu0 0.0
    %581 = vmatmul.mubr.f32.gmra.mrb[0].mxu0 %v187
    %v582 = vpop.f32.mrb[0].mxu0
    %v583 = vadd.f32 %v171, %v582
    %v584 = vpop.f32.mrb[0].mxu0
    %585 = vmatprep.mubr.f32.mxu0 0.0
    %586 = vmatmul.mubr.f32.gmra.mrb[0].mxu0 %v190
    %v587 = vpop.f32.mrb[0].mxu0
    %v588 = vadd.f32 %v176, %v587
    %v589 = vpop.f32.mrb[0].mxu0
    %590 = vdwg.mxu0
    %v591 = vmax.f32 %v583, 0.0
    %v592 = vmax.f32 %v588, 0.0
    %v593 = vadd.f32 %v514, %v591
    %v594 = vadd.f32 %v515, %v592
    %v595 = vmul.f32 %v593, 0.2
    %v596 = vmul.f32 %v594, 0.2
    %597 = vmatprep.subr.mxu0 0.0
    %598 = vmatpush1.msra.mxu0 %v593
    %599 = vmatprep.subr.mxu0 0.0
    %600 = vmatpush1.msra.mxu0 %v594
    %601 = vmatprep.subr.mxu0 0.0
    %602 = vmatpush1.msra.mxu0 0.0
    %603 = vmatprep.subr.mxu0 0.0
    %604 = vmatpush1.msra.mxu0 0.0
    %605 = vmatprep.subr.mxu0 0.0
    %606 = vmatpush1.msra.mxu0 0.0
    %607 = vmatprep.subr.mxu0 0.0
    %608 = vmatpush1.msra.mxu0 0.0
    %609 = vmatprep.subr.mxu0 0.0
    %610 = vmatpush1.msra.mxu0 0.0
    %611 = vmatprep.subr.mxu0 0.0
    %612 = vmatpush1.msra.mxu0 0.0
    %613 = vmatprep.subr.mxu0 0.0
    %614 = vmatpush1.msra.mxu0 0.0
    %615 = vmatprep.subr.mxu0 0.0
    %616 = vmatpush1.msra.mxu0 0.0
    %617 = vmatprep.subr.mxu0 0.0
    %618 = vmatpush1.msra.mxu0 0.0
    %619 = vmatprep.subr.mxu0 0.0
    %620 = vmatpush1.msra.mxu0 0.0
    %621 = vmatprep.subr.mxu0 0.0
    %622 = vmatpush1.msra.mxu0 0.0
    %623 = vmatprep.subr.mxu0 0.0
    %624 = vmatpush1.msra.mxu0 0.0
    %625 = vmatprep.subr.mxu0 0.0
    %626 = vmatpush1.msra.mxu0 0.0
    %627 = vmatprep.subr.mxu0 0.0
    %628 = vmatpush1.msra.mxu0 0.0
    %629 = vmatprep.subr.mxu0 0.0
    %630 = vmatpush1.msra.mxu0 0.0
    %631 = vmatprep.subr.mxu0 0.0
    %632 = vmatpush1.msra.mxu0 0.0
    %633 = vmatprep.subr.mxu0 0.0
    %634 = vmatpush1.msra.mxu0 0.0
    %635 = vmatprep.subr.mxu0 0.0
    %636 = vmatpush1.msra.mxu0 0.0
    %637 = vmatprep.subr.mxu0 0.0
    %638 = vmatpush1.msra.mxu0 0.0
    %639 = vmatprep.subr.mxu0 0.0
    %640 = vmatpush1.msra.mxu0 0.0
    %641 = vmatprep.subr.mxu0 0.0
    %642 = vmatpush1.msra.mxu0 0.0
    %643 = vmatprep.subr.mxu0 0.0
    %644 = vmatpush1.msra.mxu0 0.0
    %645 = vmatprep.subr.mxu0 0.0
    %646 = vmatpush1.msra.mxu0 0.0
    %647 = vmatprep.subr.mxu0 0.0
    %648 = vmatpush1.msra.mxu0 0.0
    %649 = vmatprep.subr.mxu0 0.0
    %650 = vmatpush1.msra.mxu0 0.0
    %651 = vmatprep.subr.mxu0 0.0
    %652 = vmatpush1.msra.mxu0 0.0
    %653 = vmatprep.subr.mxu0 0.0
    %654 = vmatpush1.msra.mxu0 0.0
    %655 = vmatprep.subr.mxu0 0.0
    %656 = vmatpush1.msra.mxu0 0.0
    %657 = vmatprep.subr.mxu0 0.0
    %658 = vmatpush1.msra.mxu0 0.0
    %659 = vmatprep.subr.mxu0 0.0
    %660 = vmatpush1.msra.mxu0 0.0
    %661 = vmatprep.mubr.f32.mxu0 0.0
    %662 = vmatmul.mubr.f32.gmra.mrb[0].mxu0 %v187
    %v663 = vpop.f32.mrb[0].mxu0
    %v664 = vadd.f32 %v171, %v663
    %v665 = vpop.f32.mrb[0].mxu0
    %666 = vmatprep.mubr.f32.mxu0 0.0
    %667 = vmatmul.mubr.f32.gmra.mrb[0].mxu0 %v190
    %v668 = vpop.f32.mrb[0].mxu0
    %v669 = vadd.f32 %v176, %v668
    %v670 = vpop.f32.mrb[0].mxu0
    %671 = vdwg.mxu0
    %v672 = vmax.f32 %v664, 0.0
    %v673 = vmax.f32 %v669, 0.0
    %v674 = vadd.f32 %v595, %v672
    %v675 = vadd.f32 %v596, %v673
    %v676 = vmul.f32 %v674, 0.2
    %v677 = vmul.f32 %v675, 0.2
    %678 = vmatprep.subr.mxu0 0.0
    %679 = vmatpush1.msra.mxu0 %v674
    %680 = vmatprep.subr.mxu0 0.0
    %681 = vmatpush1.msra.mxu0 %v675
    %682 = vmatprep.subr.mxu0 0.0
    %683 = vmatpush1.msra.mxu0 0.0
    %684 = vmatprep.subr.mxu0 0.0
    %685 = vmatpush1.msra.mxu0 0.0
    %686 = vmatprep.subr.mxu0 0.0
    %687 = vmatpush1.msra.mxu0 0.0
    %688 = vmatprep.subr.mxu0 0.0
    %689 = vmatpush1.msra.mxu0 0.0
    %690 = vmatprep.subr.mxu0 0.0
    %691 = vmatpush1.msra.mxu0 0.0
    %692 = vmatprep.subr.mxu0 0.0
    %693 = vmatpush1.msra.mxu0 0.0
    %694 = vmatprep.subr.mxu0 0.0
    %695 = vmatpush1.msra.mxu0 0.0
    %696 = vmatprep.subr.mxu0 0.0
    %697 = vmatpush1.msra.mxu0 0.0
    %698 = vmatprep.subr.mxu0 0.0
    %699 = vmatpush1.msra.mxu0 0.0
    %700 = vmatprep.subr.mxu0 0.0
    %701 = vmatpush1.msra.mxu0 0.0
    %702 = vmatprep.subr.mxu0 0.0
    %703 = vmatpush1.msra.mxu0 0.0
    %704 = vmatprep.subr.mxu0 0.0
    %705 = vmatpush1.msra.mxu0 0.0
    %706 = vmatprep.subr.mxu0 0.0
    %707 = vmatpush1.msra.mxu0 0.0
    %708 = vmatprep.subr.mxu0 0.0
    %709 = vmatpush1.msra.mxu0 0.0
    %710 = vmatprep.subr.mxu0 0.0
    %711 = vmatpush1.msra.mxu0 0.0
    %712 = vmatprep.subr.mxu0 0.0
    %713 = vmatpush1.msra.mxu0 0.0
    %714 = vmatprep.subr.mxu0 0.0
    %715 = vmatpush1.msra.mxu0 0.0
    %716 = vmatprep.subr.mxu0 0.0
    %717 = vmatpush1.msra.mxu0 0.0
    %718 = vmatprep.subr.mxu0 0.0
    %719 = vmatpush1.msra.mxu0 0.0
    %720 = vmatprep.subr.mxu0 0.0
    %721 = vmatpush1.msra.mxu0 0.0
    %722 = vmatprep.subr.mxu0 0.0
    %723 = vmatpush1.msra.mxu0 0.0
    %724 = vmatprep.subr.mxu0 0.0
    %725 = vmatpush1.msra.mxu0 0.0
    %726 = vmatprep.subr.mxu0 0.0
    %727 = vmatpush1.msra.mxu0 0.0
    %728 = vmatprep.subr.mxu0 0.0
    %729 = vmatpush1.msra.mxu0 0.0
    %730 = vmatprep.subr.mxu0 0.0
    %731 = vmatpush1.msra.mxu0 0.0
    %732 = vmatprep.subr.mxu0 0.0
    %733 = vmatpush1.msra.mxu0 0.0
    %734 = vmatprep.subr.mxu0 0.0
    %735 = vmatpush1.msra.mxu0 0.0
    %736 = vmatprep.subr.mxu0 0.0
    %737 = vmatpush1.msra.mxu0 0.0
    %738 = vmatprep.subr.mxu0 0.0
    %739 = vmatpush1.msra.mxu0 0.0
    %740 = vmatprep.subr.mxu0 0.0
    %741 = vmatpush1.msra.mxu0 0.0
    %742 = vmatprep.mubr.f32.mxu0 0.0
    %743 = vmatmul.mubr.f32.gmra.mrb[0].mxu0 %v187
    %v744 = vpop.f32.mrb[0].mxu0
    %v745 = vadd.f32 %v171, %v744
    %v746 = vpop.f32.mrb[0].mxu0
    %747 = vmatprep.mubr.f32.mxu0 0.0
    %748 = vmatmul.mubr.f32.gmra.mrb[0].mxu0 %v190
    %v749 = vpop.f32.mrb[0].mxu0
    %v750 = vadd.f32 %v176, %v749
    %v751 = vpop.f32.mrb[0].mxu0
    %752 = vdwg.mxu0
    %v753 = vmax.f32 %v745, 0.0
    %v754 = vmax.f32 %v750, 0.0
    %v755 = vadd.f32 %v676, %v753
    %v756 = vadd.f32 %v677, %v754
    %v757 = vmul.f32 %v755, 0.2
    %v758 = vmul.f32 %v756, 0.2
    %759 = vmatprep.subr.mxu0 0.0
    %760 = vmatpush1.msra.mxu0 %v755
    %761 = vmatprep.subr.mxu0 0.0
    %762 = vmatpush1.msra.mxu0 %v756
    %763 = vmatprep.subr.mxu0 0.0
    %764 = vmatpush1.msra.mxu0 0.0
    %765 = vmatprep.subr.mxu0 0.0
    %766 = vmatpush1.msra.mxu0 0.0
    %767 = vmatprep.subr.mxu0 0.0
    %768 = vmatpush1.msra.mxu0 0.0
    %769 = vmatprep.subr.mxu0 0.0
    %770 = vmatpush1.msra.mxu0 0.0
    %771 = vmatprep.subr.mxu0 0.0
    %772 = vmatpush1.msra.mxu0 0.0
    %773 = vmatprep.subr.mxu0 0.0
    %774 = vmatpush1.msra.mxu0 0.0
    %775 = vmatprep.subr.mxu0 0.0
    %776 = vmatpush1.msra.mxu0 0.0
    %777 = vmatprep.subr.mxu0 0.0
    %778 = vmatpush1.msra.mxu0 0.0
    %779 = vmatprep.subr.mxu0 0.0
    %780 = vmatpush1.msra.mxu0 0.0
    %781 = vmatprep.subr.mxu0 0.0
    %782 = vmatpush1.msra.mxu0 0.0
    %783 = vmatprep.subr.mxu0 0.0
    %784 = vmatpush1.msra.mxu0 0.0
    %785 = vmatprep.subr.mxu0 0.0
    %786 = vmatpush1.msra.mxu0 0.0
    %787 = vmatprep.subr.mxu0 0.0
    %788 = vmatpush1.msra.mxu0 0.0
    %789 = vmatprep.subr.mxu0 0.0
    %790 = vmatpush1.msra.mxu0 0.0
    %791 = vmatprep.subr.mxu0 0.0
    %792 = vmatpush1.msra.mxu0 0.0
    %793 = vmatprep.subr.mxu0 0.0
    %794 = vmatpush1.msra.mxu0 0.0
    %795 = vmatprep.subr.mxu0 0.0
    %796 = vmatpush1.msra.mxu0 0.0
    %797 = vmatprep.subr.mxu0 0.0
    %798 = vmatpush1.msra.mxu0 0.0
    %799 = vmatprep.subr.mxu0 0.0
    %800 = vmatpush1.msra.mxu0 0.0
    %801 = vmatprep.subr.mxu0 0.0
    %802 = vmatpush1.msra.mxu0 0.0
    %803 = vmatprep.subr.mxu0 0.0
    %804 = vmatpush1.msra.mxu0 0.0
    %805 = vmatprep.subr.mxu0 0.0
    %806 = vmatpush1.msra.mxu0 0.0
    %807 = vmatprep.subr.mxu0 0.0
    %808 = vmatpush1.msra.mxu0 0.0
    %809 = vmatprep.subr.mxu0 0.0
    %810 = vmatpush1.msra.mxu0 0.0
    %811 = vmatprep.subr.mxu0 0.0
    %812 = vmatpush1.msra.mxu0 0.0
    %813 = vmatprep.subr.mxu0 0.0
    %814 = vmatpush1.msra.mxu0 0.0
    %815 = vmatprep.subr.mxu0 0.0
    %816 = vmatpush1.msra.mxu0 0.0
    %817 = vmatprep.subr.mxu0 0.0
    %818 = vmatpush1.msra.mxu0 0.0
    %819 = vmatprep.subr.mxu0 0.0
    %820 = vmatpush1.msra.mxu0 0.0
    %821 = vmatprep.subr.mxu0 0.0
    %822 = vmatpush1.msra.mxu0 0.0
    %823 = vmatprep.mubr.f32.mxu0 0.0
    %824 = vmatmul.mubr.f32.gmra.mrb[0].mxu0 %v187
    %v825 = vpop.f32.mrb[0].mxu0
    %v826 = vadd.f32 %v171, %v825
    %v827 = vpop.f32.mrb[0].mxu0
    %828 = vmatprep.mubr.f32.mxu0 0.0
    %829 = vmatmul.mubr.f32.gmra.mrb[0].mxu0 %v190
    %v830 = vpop.f32.mrb[0].mxu0
    %v831 = vadd.f32 %v176, %v830
    %v832 = vpop.f32.mrb[0].mxu0
    %833 = vdwg.mxu0
    %v834 = vmax.f32 %v826, 0.0
    %v835 = vmax.f32 %v831, 0.0
    %v836 = vadd.f32 %v757, %v834
    %v837 = vadd.f32 %v758, %v835
    %v838 = vmul.f32 %v836, 0.2
    %v839 = vmul.f32 %v837, 0.2
    %840 = vmatprep.subr.mxu0 0.0
    %841 = vmatpush1.msra.mxu0 %v836
    %842 = vmatprep.subr.mxu0 0.0
    %843 = vmatpush1.msra.mxu0 %v837
    %844 = vmatprep.subr.mxu0 0.0
    %845 = vmatpush1.msra.mxu0 0.0
    %846 = vmatprep.subr.mxu0 0.0
    %847 = vmatpush1.msra.mxu0 0.0
    %848 = vmatprep.subr.mxu0 0.0
    %849 = vmatpush1.msra.mxu0 0.0
    %850 = vmatprep.subr.mxu0 0.0
    %851 = vmatpush1.msra.mxu0 0.0
    %852 = vmatprep.subr.mxu0 0.0
    %853 = vmatpush1.msra.mxu0 0.0
    %854 = vmatprep.subr.mxu0 0.0
    %855 = vmatpush1.msra.mxu0 0.0
    %856 = vmatprep.subr.mxu0 0.0
    %857 = vmatpush1.msra.mxu0 0.0
    %858 = vmatprep.subr.mxu0 0.0
    %859 = vmatpush1.msra.mxu0 0.0
    %860 = vmatprep.subr.mxu0 0.0
    %861 = vmatpush1.msra.mxu0 0.0
    %862 = vmatprep.subr.mxu0 0.0
    %863 = vmatpush1.msra.mxu0 0.0
    %864 = vmatprep.subr.mxu0 0.0
    %865 = vmatpush1.msra.mxu0 0.0
    %866 = vmatprep.subr.mxu0 0.0
    %867 = vmatpush1.msra.mxu0 0.0
    %868 = vmatprep.subr.mxu0 0.0
    %869 = vmatpush1.msra.mxu0 0.0
    %870 = vmatprep.subr.mxu0 0.0
    %871 = vmatpush1.msra.mxu0 0.0
    %872 = vmatprep.subr.mxu0 0.0
    %873 = vmatpush1.msra.mxu0 0.0
    %874 = vmatprep.subr.mxu0 0.0
    %875 = vmatpush1.msra.mxu0 0.0
    %876 = vmatprep.subr.mxu0 0.0
    %877 = vmatpush1.msra.mxu0 0.0
    %878 = vmatprep.subr.mxu0 0.0
    %879 = vmatpush1.msra.mxu0 0.0
    %880 = vmatprep.subr.mxu0 0.0
    %881 = vmatpush1.msra.mxu0 0.0
    %882 = vmatprep.subr.mxu0 0.0
    %883 = vmatpush1.msra.mxu0 0.0
    %884 = vmatprep.subr.mxu0 0.0
    %885 = vmatpush1.msra.mxu0 0.0
    %886 = vmatprep.subr.mxu0 0.0
    %887 = vmatpush1.msra.mxu0 0.0
    %888 = vmatprep.subr.mxu0 0.0
    %889 = vmatpush1.msra.mxu0 0.0
    %890 = vmatprep.subr.mxu0 0.0
    %891 = vmatpush1.msra.mxu0 0.0
    %892 = vmatprep.subr.mxu0 0.0
    %893 = vmatpush1.msra.mxu0 0.0
    %894 = vmatprep.subr.mxu0 0.0
    %895 = vmatpush1.msra.mxu0 0.0
    %896 = vmatprep.subr.mxu0 0.0
    %897 = vmatpush1.msra.mxu0 0.0
    %898 = vmatprep.subr.mxu0 0.0
    %899 = vmatpush1.msra.mxu0 0.0
    %900 = vmatprep.subr.mxu0 0.0
    %901 = vmatpush1.msra.mxu0 0.0
    %902 = vmatprep.subr.mxu0 0.0
    %903 = vmatpush1.msra.mxu0 0.0
    %904 = vmatprep.mubr.f32.mxu0 0.0
    %905 = vmatmul.mubr.f32.gmra.mrb[0].mxu0 %v187
    %v906 = vpop.f32.mrb[0].mxu0
    %v907 = vadd.f32 %v171, %v906
    %v908 = vpop.f32.mrb[0].mxu0
    %909 = vmatprep.mubr.f32.mxu0 0.0
    %910 = vmatmul.mubr.f32.gmra.mrb[0].mxu0 %v190
    %v911 = vpop.f32.mrb[0].mxu0
    %v912 = vadd.f32 %v176, %v911
    %v913 = vpop.f32.mrb[0].mxu0
    %914 = vdwg.mxu0
    %v915 = vmax.f32 %v907, 0.0
    %v916 = vmax.f32 %v912, 0.0
    %v917 = vadd.f32 %v838, %v915
    %v918 = vadd.f32 %v839, %v916
    %v919 = vmul.f32 %v917, 0.2
    %v920 = vmul.f32 %v918, 0.2
    %921 = vmatprep.subr.mxu0 0.0
    %922 = vmatpush1.msra.mxu0 %v917
    %923 = vmatprep.subr.mxu0 0.0
    %924 = vmatpush1.msra.mxu0 %v918
    %925 = vmatprep.subr.mxu0 0.0
    %926 = vmatpush1.msra.mxu0 0.0
    %927 = vmatprep.subr.mxu0 0.0
    %928 = vmatpush1.msra.mxu0 0.0
    %929 = vmatprep.subr.mxu0 0.0
    %930 = vmatpush1.msra.mxu0 0.0
    %931 = vmatprep.subr.mxu0 0.0
    %932 = vmatpush1.msra.mxu0 0.0
    %933 = vmatprep.subr.mxu0 0.0
    %934 = vmatpush1.msra.mxu0 0.0
    %935 = vmatprep.subr.mxu0 0.0
    %936 = vmatpush1.msra.mxu0 0.0
    %937 = vmatprep.subr.mxu0 0.0
    %938 = vmatpush1.msra.mxu0 0.0
    %939 = vmatprep.subr.mxu0 0.0
    %940 = vmatpush1.msra.mxu0 0.0
    %941 = vmatprep.subr.mxu0 0.0
    %942 = vmatpush1.msra.mxu0 0.0
    %943 = vmatprep.subr.mxu0 0.0
    %944 = vmatpush1.msra.mxu0 0.0
    %945 = vmatprep.subr.mxu0 0.0
    %946 = vmatpush1.msra.mxu0 0.0
    %947 = vmatprep.subr.mxu0 0.0
    %948 = vmatpush1.msra.mxu0 0.0
    %949 = vmatprep.subr.mxu0 0.0
    %950 = vmatpush1.msra.mxu0 0.0
    %951 = vmatprep.subr.mxu0 0.0
    %952 = vmatpush1.msra.mxu0 0.0
    %953 = vmatprep.subr.mxu0 0.0
    %954 = vmatpush1.msra.mxu0 0.0
    %955 = vmatprep.subr.mxu0 0.0
    %956 = vmatpush1.msra.mxu0 0.0
    %957 = vmatprep.subr.mxu0 0.0
    %958 = vmatpush1.msra.mxu0 0.0
    %959 = vmatprep.subr.mxu0 0.0
    %960 = vmatpush1.msra.mxu0 0.0
    %961 = vmatprep.subr.mxu0 0.0
    %962 = vmatpush1.msra.mxu0 0.0
    %963 = vmatprep.subr.mxu0 0.0
    %964 = vmatpush1.msra.mxu0 0.0
    %965 = vmatprep.subr.mxu0 0.0
    %966 = vmatpush1.msra.mxu0 0.0
    %967 = vmatprep.subr.mxu0 0.0
    %968 = vmatpush1.msra.mxu0 0.0
    %969 = vmatprep.subr.mxu0 0.0
    %970 = vmatpush1.msra.mxu0 0.0
    %971 = vmatprep.subr.mxu0 0.0
    %972 = vmatpush1.msra.mxu0 0.0
    %973 = vmatprep.subr.mxu0 0.0
    %974 = vmatpush1.msra.mxu0 0.0
    %975 = vmatprep.subr.mxu0 0.0
    %976 = vmatpush1.msra.mxu0 0.0
    %977 = vmatprep.subr.mxu0 0.0
    %978 = vmatpush1.msra.mxu0 0.0
    %979 = vmatprep.subr.mxu0 0.0
    %980 = vmatpush1.msra.mxu0 0.0
    %981 = vmatprep.subr.mxu0 0.0
    %982 = vmatpush1.msra.mxu0 0.0
    %983 = vmatprep.subr.mxu0 0.0
    %984 = vmatpush1.msra.mxu0 0.0
    %985 = vmatprep.mubr.f32.mxu0 0.0
    %986 = vmatmul.mubr.f32.gmra.mrb[0].mxu0 %v187
    %v987 = vpop.f32.mrb[0].mxu0
    %v988 = vadd.f32 %v171, %v987
    %v989 = vpop.f32.mrb[0].mxu0
    %990 = vmatprep.mubr.f32.mxu0 0.0
    %991 = vmatmul.mubr.f32.gmra.mrb[0].mxu0 %v190
    %v992 = vpop.f32.mrb[0].mxu0
    %v993 = vadd.f32 %v176, %v992
    %v994 = vpop.f32.mrb[0].mxu0
    %995 = vdwg.mxu0
    %v996 = vmax.f32 %v988, 0.0
    %v997 = vmax.f32 %v993, 0.0
    %v998 = vadd.f32 %v919, %v996
    %v999 = vadd.f32 %v920, %v997
    %v1000 = vmul.f32 %v998, 0.2
    %v1001 = vmul.f32 %v999, 0.2
    %1002 = vmatprep.subr.mxu0 0.0
    %1003 = vmatpush1.msra.mxu0 %v998
    %1004 = vmatprep.subr.mxu0 0.0
    %1005 = vmatpush1.msra.mxu0 %v999
    %1006 = vmatprep.subr.mxu0 0.0
    %1007 = vmatpush1.msra.mxu0 0.0
    %1008 = vmatprep.subr.mxu0 0.0
    %1009 = vmatpush1.msra.mxu0 0.0
    %1010 = vmatprep.subr.mxu0 0.0
    %1011 = vmatpush1.msra.mxu0 0.0
    %1012 = vmatprep.subr.mxu0 0.0
    %1013 = vmatpush1.msra.mxu0 0.0
    %1014 = vmatprep.subr.mxu0 0.0
    %1015 = vmatpush1.msra.mxu0 0.0
    %1016 = vmatprep.subr.mxu0 0.0
    %1017 = vmatpush1.msra.mxu0 0.0
    %1018 = vmatprep.subr.mxu0 0.0
    %1019 = vmatpush1.msra.mxu0 0.0
    %1020 = vmatprep.subr.mxu0 0.0
    %1021 = vmatpush1.msra.mxu0 0.0
    %1022 = vmatprep.subr.mxu0 0.0
    %1023 = vmatpush1.msra.mxu0 0.0
    %1024 = vmatprep.subr.mxu0 0.0
    %1025 = vmatpush1.msra.mxu0 0.0
    %1026 = vmatprep.subr.mxu0 0.0
    %1027 = vmatpush1.msra.mxu0 0.0
    %1028 = vmatprep.subr.mxu0 0.0
    %1029 = vmatpush1.msra.mxu0 0.0
    %1030 = vmatprep.subr.mxu0 0.0
    %1031 = vmatpush1.msra.mxu0 0.0
    %1032 = vmatprep.subr.mxu0 0.0
    %1033 = vmatpush1.msra.mxu0 0.0
    %1034 = vmatprep.subr.mxu0 0.0
    %1035 = vmatpush1.msra.mxu0 0.0
    %1036 = vmatprep.subr.mxu0 0.0
    %1037 = vmatpush1.msra.mxu0 0.0
    %1038 = vmatprep.subr.mxu0 0.0
    %1039 = vmatpush1.msra.mxu0 0.0
    %1040 = vmatprep.subr.mxu0 0.0
    %1041 = vmatpush1.msra.mxu0 0.0
    %1042 = vmatprep.subr.mxu0 0.0
    %1043 = vmatpush1.msra.mxu0 0.0
    %1044 = vmatprep.subr.mxu0 0.0
    %1045 = vmatpush1.msra.mxu0 0.0
    %1046 = vmatprep.subr.mxu0 0.0
    %1047 = vmatpush1.msra.mxu0 0.0
    %1048 = vmatprep.subr.mxu0 0.0
    %1049 = vmatpush1.msra.mxu0 0.0
    %1050 = vmatprep.subr.mxu0 0.0
    %1051 = vmatpush1.msra.mxu0 0.0
    %1052 = vmatprep.subr.mxu0 0.0
    %1053 = vmatpush1.msra.mxu0 0.0
    %1054 = vmatprep.subr.mxu0 0.0
    %1055 = vmatpush1.msra.mxu0 0.0
    %1056 = vmatprep.subr.mxu0 0.0
    %1057 = vmatpush1.msra.mxu0 0.0
    %1058 = vmatprep.subr.mxu0 0.0
    %1059 = vmatpush1.msra.mxu0 0.0
    %1060 = vmatprep.subr.mxu0 0.0
    %1061 = vmatpush1.msra.mxu0 0.0
    %1062 = vmatprep.subr.mxu0 0.0
    %1063 = vmatpush1.msra.mxu0 0.0
    %1064 = vmatprep.subr.mxu0 0.0
    %1065 = vmatpush1.msra.mxu0 0.0
    %1066 = vmatprep.mubr.f32.mxu0 0.0
    %1067 = vmatmul.mubr.f32.gmra.mrb[0].mxu0 %v187
    %v1068 = vpop.f32.mrb[0].mxu0
    %v1069 = vadd.f32 %v171, %v1068
    %v1070 = vpop.f32.mrb[0].mxu0
    %1071 = vmatprep.mubr.f32.mxu0 0.0
    %1072 = vmatmul.mubr.f32.gmra.mrb[0].mxu0 %v190
    %v1073 = vpop.f32.mrb[0].mxu0
    %v1074 = vadd.f32 %v176, %v1073
    %v1075 = vpop.f32.mrb[0].mxu0
    %1076 = vdwg.mxu0
    %v1077 = vmax.f32 %v1069, 0.0
    %v1078 = vmax.f32 %v1074, 0.0
    %v1079 = vadd.f32 %v1000, %v1077
    %v1080 = vadd.f32 %v1001, %v1078
    %v1081 = vmul.f32 %v1079, 0.2
    %v1082 = vmul.f32 %v1080, 0.2
    %1083 = vmatprep.subr.mxu0 0.0
    %1084 = vmatpush1.msra.mxu0 %v1079
    %1085 = vmatprep.subr.mxu0 0.0
    %1086 = vmatpush1.msra.mxu0 %v1080
    %1087 = vmatprep.subr.mxu0 0.0
    %1088 = vmatpush1.msra.mxu0 0.0
    %1089 = vmatprep.subr.mxu0 0.0
    %1090 = vmatpush1.msra.mxu0 0.0
    %1091 = vmatprep.subr.mxu0 0.0
    %1092 = vmatpush1.msra.mxu0 0.0
    %1093 = vmatprep.subr.mxu0 0.0
    %1094 = vmatpush1.msra.mxu0 0.0
    %1095 = vmatprep.subr.mxu0 0.0
    %1096 = vmatpush1.msra.mxu0 0.0
    %1097 = vmatprep.subr.mxu0 0.0
    %1098 = vmatpush1.msra.mxu0 0.0
    %1099 = vmatprep.subr.mxu0 0.0
    %1100 = vmatpush1.msra.mxu0 0.0
    %1101 = vmatprep.subr.mxu0 0.0
    %1102 = vmatpush1.msra.mxu0 0.0
    %1103 = vmatprep.subr.mxu0 0.0
    %1104 = vmatpush1.msra.mxu0 0.0
    %1105 = vmatprep.subr.mxu0 0.0
    %1106 = vmatpush1.msra.mxu0 0.0
    %1107 = vmatprep.subr.mxu0 0.0
    %1108 = vmatpush1.msra.mxu0 0.0
    %1109 = vmatprep.subr.mxu0 0.0
    %1110 = vmatpush1.msra.mxu0 0.0
    %1111 = vmatprep.subr.mxu0 0.0
    %1112 = vmatpush1.msra.mxu0 0.0
    %1113 = vmatprep.subr.mxu0 0.0
    %1114 = vmatpush1.msra.mxu0 0.0
    %1115 = vmatprep.subr.mxu0 0.0
    %1116 = vmatpush1.msra.mxu0 0.0
    %1117 = vmatprep.subr.mxu0 0.0
    %1118 = vmatpush1.msra.mxu0 0.0
    %1119 = vmatprep.subr.mxu0 0.0
    %1120 = vmatpush1.msra.mxu0 0.0
    %1121 = vmatprep.subr.mxu0 0.0
    %1122 = vmatpush1.msra.mxu0 0.0
    %1123 = vmatprep.subr.mxu0 0.0
    %1124 = vmatpush1.msra.mxu0 0.0
    %1125 = vmatprep.subr.mxu0 0.0
    %1126 = vmatpush1.msra.mxu0 0.0
    %1127 = vmatprep.subr.mxu0 0.0
    %1128 = vmatpush1.msra.mxu0 0.0
    %1129 = vmatprep.subr.mxu0 0.0
    %1130 = vmatpush1.msra.mxu0 0.0
    %1131 = vmatprep.subr.mxu0 0.0
    %1132 = vmatpush1.msra.mxu0 0.0
    %1133 = vmatprep.subr.mxu0 0.0
    %1134 = vmatpush1.msra.mxu0 0.0
    %1135 = vmatprep.subr.mxu0 0.0
    %1136 = vmatpush1.msra.mxu0 0.0
    %1137 = vmatprep.subr.mxu0 0.0
    %1138 = vmatpush1.msra.mxu0 0.0
    %1139 = vmatprep.subr.mxu0 0.0
    %1140 = vmatpush1.msra.mxu0 0.0
    %1141 = vmatprep.subr.mxu0 0.0
    %1142 = vmatpush1.msra.mxu0 0.0
    %1143 = vmatprep.subr.mxu0 0.0
    %1144 = vmatpush1.msra.mxu0 0.0
    %1145 = vmatprep.subr.mxu0 0.0
    %1146 = vmatpush1.msra.mxu0 0.0
    %1147 = vmatprep.mubr.f32.mxu0 0.0
    %1148 = vmatmul.mubr.f32.gmra.mrb[0].mxu0 %v187
    %v1149 = vpop.f32.mrb[0].mxu0
    %v1150 = vadd.f32 %v171, %v1149
    %v1151 = vpop.f32.mrb[0].mxu0
    %1152 = vmatprep.mubr.f32.mxu0 0.0
    %1153 = vmatmul.mubr.f32.gmra.mrb[0].mxu0 %v190
    %v1154 = vpop.f32.mrb[0].mxu0
    %v1155 = vadd.f32 %v176, %v1154
    %v1156 = vpop.f32.mrb[0].mxu0
    %1157 = vdwg.mxu0
    %v1158 = vmax.f32 %v1150, 0.0
    %v1159 = vmax.f32 %v1155, 0.0
    %v1160 = vadd.f32 %v1081, %v1158
    %v1161 = vadd.f32 %v1082, %v1159
    %v1162 = vmul.f32 %v1160, 0.2
    %v1163 = vmul.f32 %v1161, 0.2
    %1164 = vmatprep.subr.mxu0 0.0
    %1165 = vmatpush1.msra.mxu0 %v1160
    %1166 = vmatprep.subr.mxu0 0.0
    %1167 = vmatpush1.msra.mxu0 %v1161
    %1168 = vmatprep.subr.mxu0 0.0
    %1169 = vmatpush1.msra.mxu0 0.0
    %1170 = vmatprep.subr.mxu0 0.0
    %1171 = vmatpush1.msra.mxu0 0.0
    %1172 = vmatprep.subr.mxu0 0.0
    %1173 = vmatpush1.msra.mxu0 0.0
    %1174 = vmatprep.subr.mxu0 0.0
    %1175 = vmatpush1.msra.mxu0 0.0
    %1176 = vmatprep.subr.mxu0 0.0
    %1177 = vmatpush1.msra.mxu0 0.0
    %1178 = vmatprep.subr.mxu0 0.0
    %1179 = vmatpush1.msra.mxu0 0.0
    %1180 = vmatprep.subr.mxu0 0.0
    %1181 = vmatpush1.msra.mxu0 0.0
    %1182 = vmatprep.subr.mxu0 0.0
    %1183 = vmatpush1.msra.mxu0 0.0
    %1184 = vmatprep.subr.mxu0 0.0
    %1185 = vmatpush1.msra.mxu0 0.0
    %1186 = vmatprep.subr.mxu0 0.0
    %1187 = vmatpush1.msra.mxu0 0.0
    %1188 = vmatprep.subr.mxu0 0.0
    %1189 = vmatpush1.msra.mxu0 0.0
    %1190 = vmatprep.subr.mxu0 0.0
    %1191 = vmatpush1.msra.mxu0 0.0
    %1192 = vmatprep.subr.mxu0 0.0
    %1193 = vmatpush1.msra.mxu0 0.0
    %1194 = vmatprep.subr.mxu0 0.0
    %1195 = vmatpush1.msra.mxu0 0.0
    %1196 = vmatprep.subr.mxu0 0.0
    %1197 = vmatpush1.msra.mxu0 0.0
    %1198 = vmatprep.subr.mxu0 0.0
    %1199 = vmatpush1.msra.mxu0 0.0
    %1200 = vmatprep.subr.mxu0 0.0
    %1201 = vmatpush1.msra.mxu0 0.0
    %1202 = vmatprep.subr.mxu0 0.0
    %1203 = vmatpush1.msra.mxu0 0.0
    %1204 = vmatprep.subr.mxu0 0.0
    %1205 = vmatpush1.msra.mxu0 0.0
    %1206 = vmatprep.subr.mxu0 0.0
    %1207 = vmatpush1.msra.mxu0 0.0
    %1208 = vmatprep.subr.mxu0 0.0
    %1209 = vmatpush1.msra.mxu0 0.0
    %1210 = vmatprep.subr.mxu0 0.0
    %1211 = vmatpush1.msra.mxu0 0.0
    %1212 = vmatprep.subr.mxu0 0.0
    %1213 = vmatpush1.msra.mxu0 0.0
    %1214 = vmatprep.subr.mxu0 0.0
    %1215 = vmatpush1.msra.mxu0 0.0
    %1216 = vmatprep.subr.mxu0 0.0
    %1217 = vmatpush1.msra.mxu0 0.0
    %1218 = vmatprep.subr.mxu0 0.0
    %1219 = vmatpush1.msra.mxu0 0.0
    %1220 = vmatprep.subr.mxu0 0.0
    %1221 = vmatpush1.msra.mxu0 0.0
    %1222 = vmatprep.subr.mxu0 0.0
    %1223 = vmatpush1.msra.mxu0 0.0
    %1224 = vmatprep.subr.mxu0 0.0
    %1225 = vmatpush1.msra.mxu0 0.0
    %1226 = vmatprep.subr.mxu0 0.0
    %1227 = vmatpush1.msra.mxu0 0.0
    %1228 = vmatprep.mubr.f32.mxu0 0.0
    %1229 = vmatmul.mubr.f32.gmra.mrb[0].mxu0 %v187
    %v1230 = vpop.f32.mrb[0].mxu0
    %v1231 = vadd.f32 %v171, %v1230
    %v1232 = vpop.f32.mrb[0].mxu0
    %1233 = vmatprep.mubr.f32.mxu0 0.0
    %1234 = vmatmul.mubr.f32.gmra.mrb[0].mxu0 %v190
    %v1235 = vpop.f32.mrb[0].mxu0
    %v1236 = vadd.f32 %v176, %v1235
    %v1237 = vpop.f32.mrb[0].mxu0
    %1238 = vdwg.mxu0
    %v1239 = vmax.f32 %v1231, 0.0
    %v1240 = vmax.f32 %v1236, 0.0
    %v1241 = vadd.f32 %v1162, %v1239
    %v1242 = vadd.f32 %v1163, %v1240
    %v1243 = vmul.f32 %v1241, 0.2
    %v1244 = vmul.f32 %v1242, 0.2
    %1245 = vmatprep.subr.mxu0 0.0
    %1246 = vmatpush1.msra.mxu0 %v1241
    %1247 = vmatprep.subr.mxu0 0.0
    %1248 = vmatpush1.msra.mxu0 %v1242
    %1249 = vmatprep.subr.mxu0 0.0
    %1250 = vmatpush1.msra.mxu0 0.0
    %1251 = vmatprep.subr.mxu0 0.0
    %1252 = vmatpush1.msra.mxu0 0.0
    %1253 = vmatprep.subr.mxu0 0.0
    %1254 = vmatpush1.msra.mxu0 0.0
    %1255 = vmatprep.subr.mxu0 0.0
    %1256 = vmatpush1.msra.mxu0 0.0
    %1257 = vmatprep.subr.mxu0 0.0
    %1258 = vmatpush1.msra.mxu0 0.0
    %1259 = vmatprep.subr.mxu0 0.0
    %1260 = vmatpush1.msra.mxu0 0.0
    %1261 = vmatprep.subr.mxu0 0.0
    %1262 = vmatpush1.msra.mxu0 0.0
    %1263 = vmatprep.subr.mxu0 0.0
    %1264 = vmatpush1.msra.mxu0 0.0
    %1265 = vmatprep.subr.mxu0 0.0
    %1266 = vmatpush1.msra.mxu0 0.0
    %1267 = vmatprep.subr.mxu0 0.0
    %1268 = vmatpush1.msra.mxu0 0.0
    %1269 = vmatprep.subr.mxu0 0.0
    %1270 = vmatpush1.msra.mxu0 0.0
    %1271 = vmatprep.subr.mxu0 0.0
    %1272 = vmatpush1.msra.mxu0 0.0
    %1273 = vmatprep.subr.mxu0 0.0
    %1274 = vmatpush1.msra.mxu0 0.0
    %1275 = vmatprep.subr.mxu0 0.0
    %1276 = vmatpush1.msra.mxu0 0.0
    %1277 = vmatprep.subr.mxu0 0.0
    %1278 = vmatpush1.msra.mxu0 0.0
    %1279 = vmatprep.subr.mxu0 0.0
    %1280 = vmatpush1.msra.mxu0 0.0
    %1281 = vmatprep.subr.mxu0 0.0
    %1282 = vmatpush1.msra.mxu0 0.0
    %1283 = vmatprep.subr.mxu0 0.0
    %1284 = vmatpush1.msra.mxu0 0.0
    %1285 = vmatprep.subr.mxu0 0.0
    %1286 = vmatpush1.msra.mxu0 0.0
    %1287 = vmatprep.subr.mxu0 0.0
    %1288 = vmatpush1.msra.mxu0 0.0
    %1289 = vmatprep.subr.mxu0 0.0
    %1290 = vmatpush1.msra.mxu0 0.0
    %1291 = vmatprep.subr.mxu0 0.0
    %1292 = vmatpush1.msra.mxu0 0.0
    %1293 = vmatprep.subr.mxu0 0.0
    %1294 = vmatpush1.msra.mxu0 0.0
    %1295 = vmatprep.subr.mxu0 0.0
    %1296 = vmatpush1.msra.mxu0 0.0
    %1297 = vmatprep.subr.mxu0 0.0
    %1298 = vmatpush1.msra.mxu0 0.0
    %1299 = vmatprep.subr.mxu0 0.0
    %1300 = vmatpush1.msra.mxu0 0.0
    %1301 = vmatprep.subr.mxu0 0.0
    %1302 = vmatpush1.msra.mxu0 0.0
    %1303 = vmatprep.subr.mxu0 0.0
    %1304 = vmatpush1.msra.mxu0 0.0
    %1305 = vmatprep.subr.mxu0 0.0
    %1306 = vmatpush1.msra.mxu0 0.0
    %1307 = vmatprep.subr.mxu0 0.0
    %1308 = vmatpush1.msra.mxu0 0.0
    %1309 = vmatprep.mubr.f32.mxu0 0.0
    %1310 = vmatmul.mubr.f32.gmra.mrb[0].mxu0 %v187
    %v1311 = vpop.f32.mrb[0].mxu0
    %v1312 = vadd.f32 %v171, %v1311
    %v1313 = vpop.f32.mrb[0].mxu0
    %1314 = vmatprep.mubr.f32.mxu0 0.0
    %1315 = vmatmul.mubr.f32.gmra.mrb[0].mxu0 %v190
    %v1316 = vpop.f32.mrb[0].mxu0
    %v1317 = vadd.f32 %v176, %v1316
    %v1318 = vpop.f32.mrb[0].mxu0
    %1319 = vdwg.mxu0
    %v1320 = vmax.f32 %v1312, 0.0
    %v1321 = vmax.f32 %v1317, 0.0
    %v1322 = vadd.f32 %v1243, %v1320
    %v1323 = vadd.f32 %v1244, %v1321
    %v1324 = vmul.f32 %v1322, 0.2
    %v1325 = vmul.f32 %v1323, 0.2
    %1326 = vmatprep.subr.mxu0 0.0
    %1327 = vmatpush1.msra.mxu0 %v1322
    %1328 = vmatprep.subr.mxu0 0.0
    %1329 = vmatpush1.msra.mxu0 %v1323
    %1330 = vmatprep.subr.mxu0 0.0
    %1331 = vmatpush1.msra.mxu0 0.0
    %1332 = vmatprep.subr.mxu0 0.0
    %1333 = vmatpush1.msra.mxu0 0.0
    %1334 = vmatprep.subr.mxu0 0.0
    %1335 = vmatpush1.msra.mxu0 0.0
    %1336 = vmatprep.subr.mxu0 0.0
    %1337 = vmatpush1.msra.mxu0 0.0
    %1338 = vmatprep.subr.mxu0 0.0
    %1339 = vmatpush1.msra.mxu0 0.0
    %1340 = vmatprep.subr.mxu0 0.0
    %1341 = vmatpush1.msra.mxu0 0.0
    %1342 = vmatprep.subr.mxu0 0.0
    %1343 = vmatpush1.msra.mxu0 0.0
    %1344 = vmatprep.subr.mxu0 0.0
    %1345 = vmatpush1.msra.mxu0 0.0
    %1346 = vmatprep.subr.mxu0 0.0
    %1347 = vmatpush1.msra.mxu0 0.0
    %1348 = vmatprep.subr.mxu0 0.0
    %1349 = vmatpush1.msra.mxu0 0.0
    %1350 = vmatprep.subr.mxu0 0.0
    %1351 = vmatpush1.msra.mxu0 0.0
    %1352 = vmatprep.subr.mxu0 0.0
    %1353 = vmatpush1.msra.mxu0 0.0
    %1354 = vmatprep.subr.mxu0 0.0
    %1355 = vmatpush1.msra.mxu0 0.0
    %1356 = vmatprep.subr.mxu0 0.0
    %1357 = vmatpush1.msra.mxu0 0.0
    %1358 = vmatprep.subr.mxu0 0.0
    %1359 = vmatpush1.msra.mxu0 0.0
    %1360 = vmatprep.subr.mxu0 0.0
    %1361 = vmatpush1.msra.mxu0 0.0
    %1362 = vmatprep.subr.mxu0 0.0
    %1363 = vmatpush1.msra.mxu0 0.0
    %1364 = vmatprep.subr.mxu0 0.0
    %1365 = vmatpush1.msra.mxu0 0.0
    %1366 = vmatprep.subr.mxu0 0.0
    %1367 = vmatpush1.msra.mxu0 0.0
    %1368 = vmatprep.subr.mxu0 0.0
    %1369 = vmatpush1.msra.mxu0 0.0
    %1370 = vmatprep.subr.mxu0 0.0
    %1371 = vmatpush1.msra.mxu0 0.0
    %1372 = vmatprep.subr.mxu0 0.0
    %1373 = vmatpush1.msra.mxu0 0.0
    %1374 = vmatprep.subr.mxu0 0.0
    %1375 = vmatpush1.msra.mxu0 0.0
    %1376 = vmatprep.subr.mxu0 0.0
    %1377 = vmatpush1.msra.mxu0 0.0
    %1378 = vmatprep.subr.mxu0 0.0
    %1379 = vmatpush1.msra.mxu0 0.0
    %1380 = vmatprep.subr.mxu0 0.0
    %1381 = vmatpush1.msra.mxu0 0.0
    %1382 = vmatprep.subr.mxu0 0.0
    %1383 = vmatpush1.msra.mxu0 0.0
    %1384 = vmatprep.subr.mxu0 0.0
    %1385 = vmatpush1.msra.mxu0 0.0
    %1386 = vmatprep.subr.mxu0 0.0
    %1387 = vmatpush1.msra.mxu0 0.0
    %1388 = vmatprep.subr.mxu0 0.0
    %1389 = vmatpush1.msra.mxu0 0.0
    %1390 = vmatprep.mubr.f32.mxu0 0.0
    %1391 = vmatmul.mubr.f32.gmra.mrb[0].mxu0 %v187
    %v1392 = vpop.f32.mrb[0].mxu0
    %v1393 = vadd.f32 %v171, %v1392
    %v1394 = vpop.f32.mrb[0].mxu0
    %1395 = vmatprep.mubr.f32.mxu0 0.0
    %1396 = vmatmul.mubr.f32.gmra.mrb[0].mxu0 %v190
    %v1397 = vpop.f32.mrb[0].mxu0
    %v1398 = vadd.f32 %v176, %v1397
    %v1399 = vpop.f32.mrb[0].mxu0
    %1400 = vdwg.mxu0
    %v1401 = vmax.f32 %v1393, 0.0
    %v1402 = vmax.f32 %v1398, 0.0
    %v1403 = vadd.f32 %v1324, %v1401
    %v1404 = vadd.f32 %v1325, %v1402
    %v1405 = vmul.f32 %v1403, 0.2
    %v1406 = vmul.f32 %v1404, 0.2
    %1407 = vmatprep.subr.mxu0 0.0
    %1408 = vmatpush1.msra.mxu0 %v1403
    %1409 = vmatprep.subr.mxu0 0.0
    %1410 = vmatpush1.msra.mxu0 %v1404
    %1411 = vmatprep.subr.mxu0 0.0
    %1412 = vmatpush1.msra.mxu0 0.0
    %1413 = vmatprep.subr.mxu0 0.0
    %1414 = vmatpush1.msra.mxu0 0.0
    %1415 = vmatprep.subr.mxu0 0.0
    %1416 = vmatpush1.msra.mxu0 0.0
    %1417 = vmatprep.subr.mxu0 0.0
    %1418 = vmatpush1.msra.mxu0 0.0
    %1419 = vmatprep.subr.mxu0 0.0
    %1420 = vmatpush1.msra.mxu0 0.0
    %1421 = vmatprep.subr.mxu0 0.0
    %1422 = vmatpush1.msra.mxu0 0.0
    %1423 = vmatprep.subr.mxu0 0.0
    %1424 = vmatpush1.msra.mxu0 0.0
    %1425 = vmatprep.subr.mxu0 0.0
    %1426 = vmatpush1.msra.mxu0 0.0
    %1427 = vmatprep.subr.mxu0 0.0
    %1428 = vmatpush1.msra.mxu0 0.0
    %1429 = vmatprep.subr.mxu0 0.0
    %1430 = vmatpush1.msra.mxu0 0.0
    %1431 = vmatprep.subr.mxu0 0.0
    %1432 = vmatpush1.msra.mxu0 0.0
    %1433 = vmatprep.subr.mxu0 0.0
    %1434 = vmatpush1.msra.mxu0 0.0
    %1435 = vmatprep.subr.mxu0 0.0
    %1436 = vmatpush1.msra.mxu0 0.0
    %1437 = vmatprep.subr.mxu0 0.0
    %1438 = vmatpush1.msra.mxu0 0.0
    %1439 = vmatprep.subr.mxu0 0.0
    %1440 = vmatpush1.msra.mxu0 0.0
    %1441 = vmatprep.subr.mxu0 0.0
    %1442 = vmatpush1.msra.mxu0 0.0
    %1443 = vmatprep.subr.mxu0 0.0
    %1444 = vmatpush1.msra.mxu0 0.0
    %1445 = vmatprep.subr.mxu0 0.0
    %1446 = vmatpush1.msra.mxu0 0.0
    %1447 = vmatprep.subr.mxu0 0.0
    %1448 = vmatpush1.msra.mxu0 0.0
    %1449 = vmatprep.subr.mxu0 0.0
    %1450 = vmatpush1.msra.mxu0 0.0
    %1451 = vmatprep.subr.mxu0 0.0
    %1452 = vmatpush1.msra.mxu0 0.0
    %1453 = vmatprep.subr.mxu0 0.0
    %1454 = vmatpush1.msra.mxu0 0.0
    %1455 = vmatprep.subr.mxu0 0.0
    %1456 = vmatpush1.msra.mxu0 0.0
    %1457 = vmatprep.subr.mxu0 0.0
    %1458 = vmatpush1.msra.mxu0 0.0
    %1459 = vmatprep.subr.mxu0 0.0
    %1460 = vmatpush1.msra.mxu0 0.0
    %1461 = vmatprep.subr.mxu0 0.0
    %1462 = vmatpush1.msra.mxu0 0.0
    %1463 = vmatprep.subr.mxu0 0.0
    %1464 = vmatpush1.msra.mxu0 0.0
    %1465 = vmatprep.subr.mxu0 0.0
    %1466 = vmatpush1.msra.mxu0 0.0
    %1467 = vmatprep.subr.mxu0 0.0
    %1468 = vmatpush1.msra.mxu0 0.0
    %1469 = vmatprep.subr.mxu0 0.0
    %1470 = vmatpush1.msra.mxu0 0.0
    %1471 = vmatprep.mubr.f32.mxu0 0.0
    %1472 = vmatmul.mubr.f32.gmra.mrb[0].mxu0 %v187
    %v1473 = vpop.f32.mrb[0].mxu0
    %v1474 = vadd.f32 %v171, %v1473
    %v1475 = vpop.f32.mrb[0].mxu0
    %1476 = vmatprep.mubr.f32.mxu0 0.0
    %1477 = vmatmul.mubr.f32.gmra.mrb[0].mxu0 %v190
    %v1478 = vpop.f32.mrb[0].mxu0
    %v1479 = vadd.f32 %v176, %v1478
    %v1480 = vpop.f32.mrb[0].mxu0
    %1481 = vdwg.mxu0
    %v1482 = vmax.f32 %v1474, 0.0
    %v1483 = vmax.f32 %v1479, 0.0
    %v1484 = vadd.f32 %v1405, %v1482
    %v1485 = vadd.f32 %v1406, %v1483
    %v1486 = vmul.f32 %v1484, 0.2
    %v1487 = vmul.f32 %v1485, 0.2
    %1488 = vmatprep.subr.mxu0 0.0
    %1489 = vmatpush1.msra.mxu0 %v1484
    %1490 = vmatprep.subr.mxu0 0.0
    %1491 = vmatpush1.msra.mxu0 %v1485
    %1492 = vmatprep.subr.mxu0 0.0
    %1493 = vmatpush1.msra.mxu0 0.0
    %1494 = vmatprep.subr.mxu0 0.0
    %1495 = vmatpush1.msra.mxu0 0.0
    %1496 = vmatprep.subr.mxu0 0.0
    %1497 = vmatpush1.msra.mxu0 0.0
    %1498 = vmatprep.subr.mxu0 0.0
    %1499 = vmatpush1.msra.mxu0 0.0
    %1500 = vmatprep.subr.mxu0 0.0
    %1501 = vmatpush1.msra.mxu0 0.0
    %1502 = vmatprep.subr.mxu0 0.0
    %1503 = vmatpush1.msra.mxu0 0.0
    %1504 = vmatprep.subr.mxu0 0.0
    %1505 = vmatpush1.msra.mxu0 0.0
    %1506 = vmatprep.subr.mxu0 0.0
    %1507 = vmatpush1.msra.mxu0 0.0
    %1508 = vmatprep.subr.mxu0 0.0
    %1509 = vmatpush1.msra.mxu0 0.0
    %1510 = vmatprep.subr.mxu0 0.0
    %1511 = vmatpush1.msra.mxu0 0.0
    %1512 = vmatprep.subr.mxu0 0.0
    %1513 = vmatpush1.msra.mxu0 0.0
    %1514 = vmatprep.subr.mxu0 0.0
    %1515 = vmatpush1.msra.mxu0 0.0
    %1516 = vmatprep.subr.mxu0 0.0
    %1517 = vmatpush1.msra.mxu0 0.0
    %1518 = vmatprep.subr.mxu0 0.0
    %1519 = vmatpush1.msra.mxu0 0.0
    %1520 = vmatprep.subr.mxu0 0.0
    %1521 = vmatpush1.msra.mxu0 0.0
    %1522 = vmatprep.subr.mxu0 0.0
    %1523 = vmatpush1.msra.mxu0 0.0
    %1524 = vmatprep.subr.mxu0 0.0
    %1525 = vmatpush1.msra.mxu0 0.0
    %1526 = vmatprep.subr.mxu0 0.0
    %1527 = vmatpush1.msra.mxu0 0.0
    %1528 = vmatprep.subr.mxu0 0.0
    %1529 = vmatpush1.msra.mxu0 0.0
    %1530 = vmatprep.subr.mxu0 0.0
    %1531 = vmatpush1.msra.mxu0 0.0
    %1532 = vmatprep.subr.mxu0 0.0
    %1533 = vmatpush1.msra.mxu0 0.0
    %1534 = vmatprep.subr.mxu0 0.0
    %1535 = vmatpush1.msra.mxu0 0.0
    %1536 = vmatprep.subr.mxu0 0.0
    %1537 = vmatpush1.msra.mxu0 0.0
    %1538 = vmatprep.subr.mxu0 0.0
    %1539 = vmatpush1.msra.mxu0 0.0
    %1540 = vmatprep.subr.mxu0 0.0
    %1541 = vmatpush1.msra.mxu0 0.0
    %1542 = vmatprep.subr.mxu0 0.0
    %1543 = vmatpush1.msra.mxu0 0.0
    %1544 = vmatprep.subr.mxu0 0.0
    %1545 = vmatpush1.msra.mxu0 0.0
    %1546 = vmatprep.subr.mxu0 0.0
    %1547 = vmatpush1.msra.mxu0 0.0
    %1548 = vmatprep.subr.mxu0 0.0
    %1549 = vmatpush1.msra.mxu0 0.0
    %1550 = vmatprep.subr.mxu0 0.0
    %1551 = vmatpush1.msra.mxu0 0.0
    %1552 = vmatprep.mubr.f32.mxu0 0.0
    %1553 = vmatmul.mubr.f32.gmra.mrb[0].mxu0 %v187
    %v1554 = vpop.f32.mrb[0].mxu0
    %v1555 = vadd.f32 %v171, %v1554
    %v1556 = vpop.f32.mrb[0].mxu0
    %1557 = vmatprep.mubr.f32.mxu0 0.0
    %1558 = vmatmul.mubr.f32.gmra.mrb[0].mxu0 %v190
    %v1559 = vpop.f32.mrb[0].mxu0
    %v1560 = vadd.f32 %v176, %v1559
    %v1561 = vpop.f32.mrb[0].mxu0
    %1562 = vdwg.mxu0
    %v1563 = vmax.f32 %v1555, 0.0
    %v1564 = vmax.f32 %v1560, 0.0
    %v1565 = vadd.f32 %v1486, %v1563
    %v1566 = vadd.f32 %v1487, %v1564
    %v1567 = vmul.f32 %v1565, 0.2
    %v1568 = vmul.f32 %v1566, 0.2
    %1569 = vmatprep.subr.mxu0 0.0
    %1570 = vmatpush1.msra.mxu0 %v1565
    %1571 = vmatprep.subr.mxu0 0.0
    %1572 = vmatpush1.msra.mxu0 %v1566
    %1573 = vmatprep.subr.mxu0 0.0
    %1574 = vmatpush1.msra.mxu0 0.0
    %1575 = vmatprep.subr.mxu0 0.0
    %1576 = vmatpush1.msra.mxu0 0.0
    %1577 = vmatprep.subr.mxu0 0.0
    %1578 = vmatpush1.msra.mxu0 0.0
    %1579 = vmatprep.subr.mxu0 0.0
    %1580 = vmatpush1.msra.mxu0 0.0
    %1581 = vmatprep.subr.mxu0 0.0
    %1582 = vmatpush1.msra.mxu0 0.0
    %1583 = vmatprep.subr.mxu0 0.0
    %1584 = vmatpush1.msra.mxu0 0.0
    %1585 = vmatprep.subr.mxu0 0.0
    %1586 = vmatpush1.msra.mxu0 0.0
    %1587 = vmatprep.subr.mxu0 0.0
    %1588 = vmatpush1.msra.mxu0 0.0
    %1589 = vmatprep.subr.mxu0 0.0
    %1590 = vmatpush1.msra.mxu0 0.0
    %1591 = vmatprep.subr.mxu0 0.0
    %1592 = vmatpush1.msra.mxu0 0.0
    %1593 = vmatprep.subr.mxu0 0.0
    %1594 = vmatpush1.msra.mxu0 0.0
    %1595 = vmatprep.subr.mxu0 0.0
    %1596 = vmatpush1.msra.mxu0 0.0
    %1597 = vmatprep.subr.mxu0 0.0
    %1598 = vmatpush1.msra.mxu0 0.0
    %1599 = vmatprep.subr.mxu0 0.0
    %1600 = vmatpush1.msra.mxu0 0.0
    %1601 = vmatprep.subr.mxu0 0.0
    %1602 = vmatpush1.msra.mxu0 0.0
    %1603 = vmatprep.subr.mxu0 0.0
    %1604 = vmatpush1.msra.mxu0 0.0
    %1605 = vmatprep.subr.mxu0 0.0
    %1606 = vmatpush1.msra.mxu0 0.0
    %1607 = vmatprep.subr.mxu0 0.0
    %1608 = vmatpush1.msra.mxu0 0.0
    %1609 = vmatprep.subr.mxu0 0.0
    %1610 = vmatpush1.msra.mxu0 0.0
    %1611 = vmatprep.subr.mxu0 0.0
    %1612 = vmatpush1.msra.mxu0 0.0
    %1613 = vmatprep.subr.mxu0 0.0
    %1614 = vmatpush1.msra.mxu0 0.0
    %1615 = vmatprep.subr.mxu0 0.0
    %1616 = vmatpush1.msra.mxu0 0.0
    %1617 = vmatprep.subr.mxu0 0.0
    %1618 = vmatpush1.msra.mxu0 0.0
    %1619 = vmatprep.subr.mxu0 0.0
    %1620 = vmatpush1.msra.mxu0 0.0
    %1621 = vmatprep.subr.mxu0 0.0
    %1622 = vmatpush1.msra.mxu0 0.0
    %1623 = vmatprep.subr.mxu0 0.0
    %1624 = vmatpush1.msra.mxu0 0.0
    %1625 = vmatprep.subr.mxu0 0.0
    %1626 = vmatpush1.msra.mxu0 0.0
    %1627 = vmatprep.subr.mxu0 0.0
    %1628 = vmatpush1.msra.mxu0 0.0
    %1629 = vmatprep.subr.mxu0 0.0
    %1630 = vmatpush1.msra.mxu0 0.0
    %1631 = vmatprep.subr.mxu0 0.0
    %1632 = vmatpush1.msra.mxu0 0.0
    %1633 = vmatprep.mubr.f32.mxu0 0.0
    %1634 = vmatmul.mubr.f32.gmra.mrb[0].mxu0 %v187
    %v1635 = vpop.f32.mrb[0].mxu0
    %v1636 = vadd.f32 %v171, %v1635
    %v1637 = vpop.f32.mrb[0].mxu0
    %1638 = vmatprep.mubr.f32.mxu0 0.0
    %1639 = vmatmul.mubr.f32.gmra.mrb[0].mxu0 %v190
    %v1640 = vpop.f32.mrb[0].mxu0
    %v1641 = vadd.f32 %v176, %v1640
    %v1642 = vpop.f32.mrb[0].mxu0
    %1643 = vdwg.mxu0
    %v1644 = vmax.f32 %v1636, 0.0
    %v1645 = vmax.f32 %v1641, 0.0
    %v1646 = vadd.f32 %v1567, %v1644
    %v1647 = vadd.f32 %v1568, %v1645
    %v1648 = vmul.f32 %v1646, 0.2
    %v1649 = vmul.f32 %v1647, 0.2
    %1650 = vmatprep.subr.mxu0 0.0
    %1651 = vmatpush1.msra.mxu0 %v1646
    %1652 = vmatprep.subr.mxu0 0.0
    %1653 = vmatpush1.msra.mxu0 %v1647
    %1654 = vmatprep.subr.mxu0 0.0
    %1655 = vmatpush1.msra.mxu0 0.0
    %1656 = vmatprep.subr.mxu0 0.0
    %1657 = vmatpush1.msra.mxu0 0.0
    %1658 = vmatprep.subr.mxu0 0.0
    %1659 = vmatpush1.msra.mxu0 0.0
    %1660 = vmatprep.subr.mxu0 0.0
    %1661 = vmatpush1.msra.mxu0 0.0
    %1662 = vmatprep.subr.mxu0 0.0
    %1663 = vmatpush1.msra.mxu0 0.0
    %1664 = vmatprep.subr.mxu0 0.0
    %1665 = vmatpush1.msra.mxu0 0.0
    %1666 = vmatprep.subr.mxu0 0.0
    %1667 = vmatpush1.msra.mxu0 0.0
    %1668 = vmatprep.subr.mxu0 0.0
    %1669 = vmatpush1.msra.mxu0 0.0
    %1670 = vmatprep.subr.mxu0 0.0
    %1671 = vmatpush1.msra.mxu0 0.0
    %1672 = vmatprep.subr.mxu0 0.0
    %1673 = vmatpush1.msra.mxu0 0.0
    %1674 = vmatprep.subr.mxu0 0.0
    %1675 = vmatpush1.msra.mxu0 0.0
    %1676 = vmatprep.subr.mxu0 0.0
    %1677 = vmatpush1.msra.mxu0 0.0
    %1678 = vmatprep.subr.mxu0 0.0
    %1679 = vmatpush1.msra.mxu0 0.0
    %1680 = vmatprep.subr.mxu0 0.0
    %1681 = vmatpush1.msra.mxu0 0.0
    %1682 = vmatprep.subr.mxu0 0.0
    %1683 = vmatpush1.msra.mxu0 0.0
    %1684 = vmatprep.subr.mxu0 0.0
    %1685 = vmatpush1.msra.mxu0 0.0
    %1686 = vmatprep.subr.mxu0 0.0
    %1687 = vmatpush1.msra.mxu0 0.0
    %1688 = vmatprep.subr.mxu0 0.0
    %1689 = vmatpush1.msra.mxu0 0.0
    %1690 = vmatprep.subr.mxu0 0.0
    %1691 = vmatpush1.msra.mxu0 0.0
    %1692 = vmatprep.subr.mxu0 0.0
    %1693 = vmatpush1.msra.mxu0 0.0
    %1694 = vmatprep.subr.mxu0 0.0
    %1695 = vmatpush1.msra.mxu0 0.0
    %1696 = vmatprep.subr.mxu0 0.0
    %1697 = vmatpush1.msra.mxu0 0.0
    %1698 = vmatprep.subr.mxu0 0.0
    %1699 = vmatpush1.msra.mxu0 0.0
    %1700 = vmatprep.subr.mxu0 0.0
    %1701 = vmatpush1.msra.mxu0 0.0
    %1702 = vmatprep.subr.mxu0 0.0
    %1703 = vmatpush1.msra.mxu0 0.0
    %1704 = vmatprep.subr.mxu0 0.0
    %1705 = vmatpush1.msra.mxu0 0.0
    %1706 = vmatprep.subr.mxu0 0.0
    %1707 = vmatpush1.msra.mxu0 0.0
    %1708 = vmatprep.subr.mxu0 0.0
    %1709 = vmatpush1.msra.mxu0 0.0
    %1710 = vmatprep.subr.mxu0 0.0
    %1711 = vmatpush1.msra.mxu0 0.0
    %1712 = vmatprep.subr.mxu0 0.0
    %1713 = vmatpush1.msra.mxu0 0.0
    %1714 = vmatprep.mubr.f32.mxu0 0.0
    %1715 = vmatmul.mubr.f32.gmra.mrb[0].mxu0 %v187
    %v1716 = vpop.f32.mrb[0].mxu0
    %v1717 = vadd.f32 %v171, %v1716
    %v1718 = vpop.f32.mrb[0].mxu0
    %1719 = vmatprep.mubr.f32.mxu0 0.0
    %1720 = vmatmul.mubr.f32.gmra.mrb[0].mxu0 %v190
    %v1721 = vpop.f32.mrb[0].mxu0
    %v1722 = vadd.f32 %v176, %v1721
    %v1723 = vpop.f32.mrb[0].mxu0
    %1724 = vdwg.mxu0
    %v1725 = vmax.f32 %v1717, 0.0
    %v1726 = vmax.f32 %v1722, 0.0
    %v1727 = vadd.f32 %v1648, %v1725
    %v1728 = vadd.f32 %v1649, %v1726
    %v1729 = vmax.f32 %v1727, 0.0
    %v1730 = vmax.f32 %v1728, 0.0
    %v1731 = vld [vmem:[#allocation8] sm:$0xff]
    %v1732 = vld [vmem:[#allocation8 + $0x8] sm:$0xff]
    %v1733 = vld [vmem:[#allocation8 + $0x10] sm:$0xff]
    %v1734 = vld [vmem:[#allocation8 + $0x18] sm:$0xff]
    %v1735 = vld [vmem:[#allocation8 + $0x20] sm:$0xff]
    %v1736 = vld [vmem:[#allocation8 + $0x28] sm:$0xff]
    %v1737 = vld [vmem:[#allocation8 + $0x30] sm:$0xff]
    %v1738 = vld [vmem:[#allocation8 + $0x38] sm:$0xff]
    %v1739 = vld [vmem:[#allocation8 + $0x40] sm:$0xff]
    %v1740 = vld [vmem:[#allocation8 + $0x48] sm:$0xff]
    %v1741 = vld [vmem:[#allocation8 + $0x50] sm:$0xff]
    %v1742 = vld [vmem:[#allocation8 + $0x58] sm:$0xff]
    %v1743 = vld [vmem:[#allocation8 + $0x60] sm:$0xff]
    %v1744 = vld [vmem:[#allocation8 + $0x68] sm:$0xff]
    %v1745 = vld [vmem:[#allocation8 + $0x70] sm:$0xff]
    %v1746 = vld [vmem:[#allocation8 + $0x78] sm:$0xff]
    %v1747 = vld [vmem:[%s5] sm:$0x1]
    %v1749 = vlaneseq
    %v1750 = vshrl.u32 %v1749, 7
    %v1751 = vsub.s32 0, %v1750
    %v1752 = vrot.slane %v1747, %v1751
    %1754 = vmatprep.subr.mxu0 0.0
    %1755 = vmatpush1.msra.mxu0 %v1731
    %1756 = vmatprep.subr.mxu0 0.0
    %1757 = vmatpush1.msra.mxu0 %v1732
    %1758 = vmatprep.subr.mxu0 0.0
    %1759 = vmatpush1.msra.mxu0 %v1733
    %1760 = vmatprep.subr.mxu0 0.0
    %1761 = vmatpush1.msra.mxu0 %v1734
    %1762 = vmatprep.subr.mxu0 0.0
    %1763 = vmatpush1.msra.mxu0 %v1735
    %1764 = vmatprep.subr.mxu0 0.0
    %1765 = vmatpush1.msra.mxu0 %v1736
    %1766 = vmatprep.subr.mxu0 0.0
    %1767 = vmatpush1.msra.mxu0 %v1737
    %1768 = vmatprep.subr.mxu0 0.0
    %1769 = vmatpush1.msra.mxu0 %v1738
    %1770 = vmatprep.subr.mxu0 0.0
    %1771 = vmatpush1.msra.mxu0 %v1739
    %1772 = vmatprep.subr.mxu0 0.0
    %1773 = vmatpush1.msra.mxu0 %v1740
    %1774 = vmatprep.subr.mxu0 0.0
    %1775 = vmatpush1.msra.mxu0 %v1741
    %1776 = vmatprep.subr.mxu0 0.0
    %1777 = vmatpush1.msra.mxu0 %v1742
    %1778 = vmatprep.subr.mxu0 0.0
    %1779 = vmatpush1.msra.mxu0 %v1743
    %1780 = vmatprep.subr.mxu0 0.0
    %1781 = vmatpush1.msra.mxu0 %v1744
    %1782 = vmatprep.subr.mxu0 0.0
    %1783 = vmatpush1.msra.mxu0 %v1745
    %1784 = vmatprep.subr.mxu0 0.0
    %1785 = vmatpush1.msra.mxu0 %v1746
    %1786 = vmatprep.subr.mxu0 0.0
    %1787 = vmatpush1.msra.mxu0 0.0
    %1788 = vmatprep.subr.mxu0 0.0
    %1789 = vmatpush1.msra.mxu0 0.0
    %1790 = vmatprep.subr.mxu0 0.0
    %1791 = vmatpush1.msra.mxu0 0.0
    %1792 = vmatprep.subr.mxu0 0.0
    %1793 = vmatpush1.msra.mxu0 0.0
    %1794 = vmatprep.subr.mxu0 0.0
    %1795 = vmatpush1.msra.mxu0 0.0
    %1796 = vmatprep.subr.mxu0 0.0
    %1797 = vmatpush1.msra.mxu0 0.0
    %1798 = vmatprep.subr.mxu0 0.0
    %1799 = vmatpush1.msra.mxu0 0.0
    %1800 = vmatprep.subr.mxu0 0.0
    %1801 = vmatpush1.msra.mxu0 0.0
    %1802 = vmatprep.subr.mxu0 0.0
    %1803 = vmatpush1.msra.mxu0 0.0
    %1804 = vmatprep.subr.mxu0 0.0
    %1805 = vmatpush1.msra.mxu0 0.0
    %1806 = vmatprep.subr.mxu0 0.0
    %1807 = vmatpush1.msra.mxu0 0.0
    %1808 = vmatprep.subr.mxu0 0.0
    %1809 = vmatpush1.msra.mxu0 0.0
    %1810 = vmatprep.subr.mxu0 0.0
    %1811 = vmatpush1.msra.mxu0 0.0
    %1812 = vmatprep.subr.mxu0 0.0
    %1813 = vmatpush1.msra.mxu0 0.0
    %1814 = vmatprep.subr.mxu0 0.0
    %1815 = vmatpush1.msra.mxu0 0.0
    %1816 = vmatprep.subr.mxu0 0.0
    %1817 = vmatpush1.msra.mxu0 0.0
    %1818 = vmatprep.mubr.f32.mxu0 0.0
    %1819 = vmatmul.mubr.f32.gmra.mrb[0].mxu0 %v1729
    %v1820 = vpop.f32.mrb[0].mxu0
    %v1821 = vadd.f32 %v1752, %v1820
    %v1822 = vpop.f32.mrb[0].mxu0
    %1823 = vmatprep.mubr.f32.mxu0 0.0
    %1824 = vmatmul.mubr.f32.gmra.mrb[0].mxu0 %v1730
    %v1825 = vpop.f32.mrb[0].mxu0
    %v1826 = vadd.f32 %v1752, %v1825
    %v1827 = vpop.f32.mrb[0].mxu0
    %1828 = vdwg.mxu0
    %1829 = vst [vmem:[#allocation10] sm:$0xff] %v1821
    %1830 = vst [vmem:[#allocation10 + $0x8] sm:$0xff] %v1826
    // Predicated region
    $region42: #{tpu_custom_call.1} parent=1 // pred_check
      _
    $region43: #{tpu_custom_call.1} parent=1 // pred_check_branch
      %1832 = sbr.rel (0) target = $region45
    $region44: #{tpu_custom_call.1} parent=1 // pred_region
      %s1834 = ssub.s32 256, 256
      %1835 = vsyncadd [#allocation4], %s1834
      %s1836 = sshll.u32 [#allocation10], 4
      %s1837 = int_to_ptr.vmem [resolvable:$true] %s1836
      %1842 = dma.vmem_to_hbm [thread:$0]  %s1837, 256, %s6, [#allocation4], 128, 128, 8
    $region45: #{tpu_custom_call.1} parent=1 // pred_fallthru
      _
    // Predicated region
    $region46: #{tpu_custom_call.1} parent=1 // pred_check
      _
    $region47: #{tpu_custom_call.1} parent=1 // pred_check_branch
      %1844 = sbr.rel (0) target = $region49
    $region48: #{tpu_custom_call.1} parent=1 // pred_region
      %1845 = dma.done [#allocation4], 256
    $region49: #{tpu_custom_call.1} parent=1 // pred_fallthru
      _
    %1846 = vsyncpa [#allocation3], 1
    %1847 = vsyncpa [#allocation6], 1
    %1848 = vsyncpa [#allocation9], 1
    %1849 = vsyncpa [#allocation4], 1

</llo_original>
